<compile_context>
chip_gen: v6e
topology: v6e:2x2x1
jax: 0.10.0
libtpu: 0.0.40
codegen_flags: <defaults>
</compile_context>

<pallas_src>
import jax
import jax.numpy as jnp
import numpy as np
from jax.experimental import pallas as pl
from jax.experimental.pallas import tpu as pltpu


def _round_up(x, m):
    return (x + m - 1) // m * m


def nbow_kernel(ids_ref, emb_ref, w_ref, b_ref, out_ref, pooled_acc):
    # ids_ref    : (Bt, S)        int32   (same block for every vocab tile)
    # emb_ref    : (Vt, E_pad)    bf16    (current vocab tile, streamed HBM->VMEM)
    # w_ref      : (E_pad, O_pad) f32
    # b_ref      : (1, O_pad)     f32
    # out_ref    : (Bt, O_pad)    f32     (written on the last vocab tile only)
    # pooled_acc : (Bt, E_pad)    f32     VMEM accumulator (sum over S; /S at the end)
    v_idx = pl.program_id(1)

    @pl.when(v_idx == 0)
    def _init():
        pooled_acc[...] = jnp.zeros_like(pooled_acc)

    Bt, S = ids_ref.shape
    Vt = emb_ref.shape[0]

    # Offset the ids (Bt*S adds) instead of the iota (Bt*Vt adds).
    ids_local = ids_ref[...] - v_idx * Vt                          # (Bt, S) int32
    vocab_iota = jax.lax.broadcasted_iota(jnp.int32, (Bt, Vt), 1)  # (Bt, Vt)

    # Per-row token counts for this vocab tile: unrolled 2D compare-and-add over S.
    # No 3D one-hot is ever materialized, so no vreg spill traffic.
    counts = jnp.zeros((Bt, Vt), jnp.float32)
    for s in range(S):  # S is static -> fully unrolled, LLO-visible
        counts = counts + (vocab_iota == ids_local[:, s:s + 1]).astype(jnp.float32)

    # counts are exact small integers (<= S), so the bf16 cast is lossless for
    # S <= 256; bf16 MXU with f32 accumulation.
    pooled_acc[...] += jnp.dot(counts.astype(jnp.bfloat16), emb_ref[...],
                               preferred_element_type=jnp.float32)

    @pl.when(v_idx == pl.num_programs(1) - 1)
    def _finalize():
        pooled = pooled_acc[...] * jnp.float32(1.0 / S)  # mean applied once
        out_ref[...] = (jnp.dot(pooled, w_ref[...],
                                preferred_element_type=jnp.float32)
                        + b_ref[...])


def nbow_forward(ids, emb_table, fc_w, fc_b, *, v_tile=512):
    """ids: [B, S] int32; emb_table: [V, E]; fc_w: [E, O]; fc_b: [O]."""
    B, S = ids.shape
    V, E = emb_table.shape
    O = fc_w.shape[1]

    # --- tile sizes / padding ------------------------------------------------
    # Batch: sublane-aligned; capped at 64 so B >= 128 gives >= 2 "parallel"
    # tiles (keeps both v7x TensorCores busy on the compute-bound counts path).
    Bt = min(64, _round_up(B, 8))
    B_pad = _round_up(B, Bt)
    # Vocab: 512-row tiles by default (bigger streamed DMAs, fewer grid steps).
    Vt = v_tile if V >= v_tile else _round_up(V, 8)
    V_pad = _round_up(V, Vt)
    # Lane-dense embedding / output dims (unmasked full-lane stores).
    E_pad = _round_up(E, 128)
    O_pad = _round_up(O, 128)

    # Padded batch rows use id -1 (never matches any vocab index -> zero counts).
    ids_p = jnp.full((B_pad, S), -1, dtype=jnp.int32).at[:B, :].set(ids.astype(jnp.int32))
    # Embedding streamed in bf16: halves HBM traffic, fast MXU path. Padded vocab
    # rows / embedding columns are zero so they contribute nothing.
    emb_p = jnp.pad(emb_table.astype(jnp.float32),
                    ((0, V_pad - V), (0, E_pad - E))).astype(jnp.bfloat16)
    w_p = jnp.pad(fc_w.astype(jnp.float32), ((0, E_pad - E), (0, O_pad - O)))
    b_p = jnp.pad(fc_b.astype(jnp.float32).reshape(1, O), ((0, 0), (0, O_pad - O)))

    grid = (B_pad // Bt, V_pad // Vt)

    # Explicit VMEM budget (double-buffered blocks + accumulator + counts/iota
    # working set) so one tiling config stays portable across v5e/v6e/v7x.
    vmem_bytes = 2 * (Vt * E_pad * 2        # emb tile (bf16), double-buffered
                      + Bt * S * 4          # ids tile
                      + E_pad * O_pad * 4   # fc weight
                      + O_pad * 4           # fc bias
                      + Bt * O_pad * 4)     # out tile
    vmem_bytes += Bt * E_pad * 4            # pooled accumulator
    vmem_bytes += 3 * Bt * Vt * 4           # counts / iota / temporaries
    vmem_limit = int(min(max(2 * vmem_bytes, 8 << 20), 64 << 20))

    out = pl.pallas_call(
        nbow_kernel,
        out_shape=jax.ShapeDtypeStruct((B_pad, O_pad), jnp.float32),
        grid_spec=pltpu.PrefetchScalarGridSpec(
            num_scalar_prefetch=0,
            grid=grid,
            in_specs=[
                pl.BlockSpec((Bt, S), lambda b, v: (b, 0)),          # ids
                pl.BlockSpec((Vt, E_pad), lambda b, v: (v, 0)),      # embedding tile
                pl.BlockSpec((E_pad, O_pad), lambda b, v: (0, 0)),   # fc weight
                pl.BlockSpec((1, O_pad), lambda b, v: (0, 0)),       # fc bias
            ],
            out_specs=pl.BlockSpec((Bt, O_pad), lambda b, v: (b, 0)),
            scratch_shapes=[pltpu.VMEM((Bt, E_pad), jnp.float32)],
        ),
        compiler_params=pltpu.CompilerParams(
            dimension_semantics=("parallel", "arbitrary"),
            vmem_limit_bytes=vmem_limit,
        ),
    )(ids_p, emb_p, w_p, b_p)

    # TODO(synk): for production vocab sizes (V >> a few K), switch to a
    # scalar-prefetch DMA row-gather (ids in SMEM via PrefetchScalarGridSpec,
    # table kept in HBM with memory_space=pl.ANY, double-buffered
    # make_async_copy of only the B*S referenced rows) -- O(B*S*E) HBM bytes
    # instead of streaming the whole table per batch tile.
    return out[:B, :O]


if __name__ == "__main__":
    # Small, module-consistent synthetic shapes; V=1024 with Vt=512 exercises the
    # multi-tile accumulate path, E=300 exercises the non-aligned embedding dim.
    B, S = 8, 16              # batch, sequence length
    V, E, O = 1024, 300, 8    # vocab_Size, embedding_Dim, output_Dim
    pad_index = 0

    key = jax.random.PRNGKey(0)
    k_emb, k_w, k_b, k_ids = jax.random.split(key, 4)

    # nn.Embedding init (N(0,1)), with the padding row zeroed.
    emb_table = jax.random.normal(k_emb, (V, E), dtype=jnp.float32)
    emb_table = emb_table.at[pad_index].set(0.0)

    # nn.Linear init (uniform(-1/sqrt(E), 1/sqrt(E))), stored as [E, O].
    bound = 1.0 / np.sqrt(E)
    fc_w = jax.random.uniform(k_w, (E, O), dtype=jnp.float32,
                              minval=-bound, maxval=bound)
    fc_b = jax.random.uniform(k_b, (O,), dtype=jnp.float32,
                              minval=-bound, maxval=bound)

    ids = jax.random.randint(k_ids, (B, S), 0, V, dtype=jnp.int32)

    out = nbow_forward(ids, emb_table, fc_w, fc_b)
    out = jax.block_until_ready(out)

    # Pure-JAX f32 reference of the PyTorch forward (kernel streams emb in bf16,
    # hence the relaxed tolerance).
    ref = jnp.take(emb_table, ids, axis=0).mean(axis=1) @ fc_w + fc_b
    np.testing.assert_allclose(np.asarray(out), np.asarray(ref),
                               rtol=2e-2, atol=2e-2)

    print("KERNEL_OK")
</pallas_src>

<mosaic_0001>
module attributes {stable_mosaic.version = 11 : i64} {
  func.func @nbow_kernel(%arg0: i32, %arg1: i32, %arg2: memref<8x16xi32, #tpu.memory_space<vmem>>, %arg3: memref<512x384xbf16, #tpu.memory_space<vmem>>, %arg4: memref<384x128xf32, #tpu.memory_space<vmem>>, %arg5: memref<1x128xf32, #tpu.memory_space<vmem>>, %arg6: memref<8x128xf32, #tpu.memory_space<vmem>>, %arg7: memref<8x384xf32, #tpu.memory_space<vmem>>) attributes {dimension_semantics = [#tpu.dimension_semantics<parallel>, #tpu.dimension_semantics<arbitrary>], iteration_bounds = array<i64: 1, 2>, scalar_prefetch = 0 : i64, scratch_operands = 1 : i64, tpu.core_type = #tpu.core_type<tc>, window_params = [{transform_indices = @transform_0, window_bounds = array<i64: 8, 16>}, {transform_indices = @transform_1, window_bounds = array<i64: 512, 384>}, {pipeline_mode = #tpu.pipeline_mode<synchronous>, transform_indices = @transform_2, window_bounds = array<i64: 384, 128>}, {pipeline_mode = #tpu.pipeline_mode<synchronous>, transform_indices = @transform_3, window_bounds = array<i64: 1, 128>}, {transform_indices = @transform_4, window_bounds = array<i64: 8, 128>}]} {
    %c0_i32 = arith.constant 0 : i32
    %0 = arith.cmpi eq, %arg1, %c0_i32 : i32
    %1 = arith.extui %0 : i1 to i32
    %c0_i32_0 = arith.constant 0 : i32
    %2 = arith.cmpi ne, %1, %c0_i32_0 : i32
    scf.if %2 {
      %cst_10 = arith.constant 0.000000e+00 : f32
      %114 = vector.broadcast %cst_10 : f32 to vector<8x384xf32>
      %c0_11 = arith.constant 0 : index
      %c0_12 = arith.constant 0 : index
      %115 = vector.load %arg7[%c0_11, %c0_12] : memref<8x384xf32, #tpu.memory_space<vmem>>, vector<8x384xf32>
      tpu.vector_store %arg7[%c0_11, %c0_12], %114 {strides = array<i32>} : memref<8x384xf32, #tpu.memory_space<vmem>>, vector<8x384xf32>,
    } else {
    }
    %c0 = arith.constant 0 : index
    %c0_1 = arith.constant 0 : index
    %3 = vector.load %arg2[%c0, %c0_1] : memref<8x16xi32, #tpu.memory_space<vmem>>, vector<8x16xi32>
    %c512_i32 = arith.constant 512 : i32
    %4 = arith.muli %arg1, %c512_i32 : i32
    %5 = vector.broadcast %4 : i32 to vector<8x16xi32>
    %6 = arith.subi %3, %5 : vector<8x16xi32>
    %7 = tpu.iota {dimensions = array<i32: 1>} : vector<8x512xi32>
    %cst = arith.constant 0.000000e+00 : f32
    %8 = vector.broadcast %cst : f32 to vector<8x512xf32>
    %9 = vector.extract_strided_slice %6 {offsets = [0, 0], sizes = [8, 1], strides = [1, 1]} : vector<8x16xi32> to vector<8x1xi32>
    %10 = vector.broadcast %9 : vector<8x1xi32> to vector<8x512xi32>
    %11 = arith.cmpi eq, %7, %10 : vector<8x512xi32>
    %12 = arith.extui %11 : vector<8x512xi1> to vector<8x512xi32>
    %13 = arith.sitofp %12 : vector<8x512xi32> to vector<8x512xf32>
    %14 = arith.addf %8, %13 : vector<8x512xf32>
    %15 = vector.extract_strided_slice %6 {offsets = [0, 1], sizes = [8, 1], strides = [1, 1]} : vector<8x16xi32> to vector<8x1xi32>
    %16 = vector.broadcast %15 : vector<8x1xi32> to vector<8x512xi32>
    %17 = arith.cmpi eq, %7, %16 : vector<8x512xi32>
    %18 = arith.extui %17 : vector<8x512xi1> to vector<8x512xi32>
    %19 = arith.sitofp %18 : vector<8x512xi32> to vector<8x512xf32>
    %20 = arith.addf %14, %19 : vector<8x512xf32>
    %21 = vector.extract_strided_slice %6 {offsets = [0, 2], sizes = [8, 1], strides = [1, 1]} : vector<8x16xi32> to vector<8x1xi32>
    %22 = vector.broadcast %21 : vector<8x1xi32> to vector<8x512xi32>
    %23 = arith.cmpi eq, %7, %22 : vector<8x512xi32>
    %24 = arith.extui %23 : vector<8x512xi1> to vector<8x512xi32>
    %25 = arith.sitofp %24 : vector<8x512xi32> to vector<8x512xf32>
    %26 = arith.addf %20, %25 : vector<8x512xf32>
    %27 = vector.extract_strided_slice %6 {offsets = [0, 3], sizes = [8, 1], strides = [1, 1]} : vector<8x16xi32> to vector<8x1xi32>
    %28 = vector.broadcast %27 : vector<8x1xi32> to vector<8x512xi32>
    %29 = arith.cmpi eq, %7, %28 : vector<8x512xi32>
    %30 = arith.extui %29 : vector<8x512xi1> to vector<8x512xi32>
    %31 = arith.sitofp %30 : vector<8x512xi32> to vector<8x512xf32>
    %32 = arith.addf %26, %31 : vector<8x512xf32>
    %33 = vector.extract_strided_slice %6 {offsets = [0, 4], sizes = [8, 1], strides = [1, 1]} : vector<8x16xi32> to vector<8x1xi32>
    %34 = vector.broadcast %33 : vector<8x1xi32> to vector<8x512xi32>
    %35 = arith.cmpi eq, %7, %34 : vector<8x512xi32>
    %36 = arith.extui %35 : vector<8x512xi1> to vector<8x512xi32>
    %37 = arith.sitofp %36 : vector<8x512xi32> to vector<8x512xf32>
    %38 = arith.addf %32, %37 : vector<8x512xf32>
    %39 = vector.extract_strided_slice %6 {offsets = [0, 5], sizes = [8, 1], strides = [1, 1]} : vector<8x16xi32> to vector<8x1xi32>
    %40 = vector.broadcast %39 : vector<8x1xi32> to vector<8x512xi32>
    %41 = arith.cmpi eq, %7, %40 : vector<8x512xi32>
    %42 = arith.extui %41 : vector<8x512xi1> to vector<8x512xi32>
    %43 = arith.sitofp %42 : vector<8x512xi32> to vector<8x512xf32>
    %44 = arith.addf %38, %43 : vector<8x512xf32>
    %45 = vector.extract_strided_slice %6 {offsets = [0, 6], sizes = [8, 1], strides = [1, 1]} : vector<8x16xi32> to vector<8x1xi32>
    %46 = vector.broadcast %45 : vector<8x1xi32> to vector<8x512xi32>
    %47 = arith.cmpi eq, %7, %46 : vector<8x512xi32>
    %48 = arith.extui %47 : vector<8x512xi1> to vector<8x512xi32>
    %49 = arith.sitofp %48 : vector<8x512xi32> to vector<8x512xf32>
    %50 = arith.addf %44, %49 : vector<8x512xf32>
    %51 = vector.extract_strided_slice %6 {offsets = [0, 7], sizes = [8, 1], strides = [1, 1]} : vector<8x16xi32> to vector<8x1xi32>
    %52 = vector.broadcast %51 : vector<8x1xi32> to vector<8x512xi32>
    %53 = arith.cmpi eq, %7, %52 : vector<8x512xi32>
    %54 = arith.extui %53 : vector<8x512xi1> to vector<8x512xi32>
    %55 = arith.sitofp %54 : vector<8x512xi32> to vector<8x512xf32>
    %56 = arith.addf %50, %55 : vector<8x512xf32>
    %57 = vector.extract_strided_slice %6 {offsets = [0, 8], sizes = [8, 1], strides = [1, 1]} : vector<8x16xi32> to vector<8x1xi32>
    %58 = vector.broadcast %57 : vector<8x1xi32> to vector<8x512xi32>
    %59 = arith.cmpi eq, %7, %58 : vector<8x512xi32>
    %60 = arith.extui %59 : vector<8x512xi1> to vector<8x512xi32>
    %61 = arith.sitofp %60 : vector<8x512xi32> to vector<8x512xf32>
    %62 = arith.addf %56, %61 : vector<8x512xf32>
    %63 = vector.extract_strided_slice %6 {offsets = [0, 9], sizes = [8, 1], strides = [1, 1]} : vector<8x16xi32> to vector<8x1xi32>
    %64 = vector.broadcast %63 : vector<8x1xi32> to vector<8x512xi32>
    %65 = arith.cmpi eq, %7, %64 : vector<8x512xi32>
    %66 = arith.extui %65 : vector<8x512xi1> to vector<8x512xi32>
    %67 = arith.sitofp %66 : vector<8x512xi32> to vector<8x512xf32>
    %68 = arith.addf %62, %67 : vector<8x512xf32>
    %69 = vector.extract_strided_slice %6 {offsets = [0, 10], sizes = [8, 1], strides = [1, 1]} : vector<8x16xi32> to vector<8x1xi32>
    %70 = vector.broadcast %69 : vector<8x1xi32> to vector<8x512xi32>
    %71 = arith.cmpi eq, %7, %70 : vector<8x512xi32>
    %72 = arith.extui %71 : vector<8x512xi1> to vector<8x512xi32>
    %73 = arith.sitofp %72 : vector<8x512xi32> to vector<8x512xf32>
    %74 = arith.addf %68, %73 : vector<8x512xf32>
    %75 = vector.extract_strided_slice %6 {offsets = [0, 11], sizes = [8, 1], strides = [1, 1]} : vector<8x16xi32> to vector<8x1xi32>
    %76 = vector.broadcast %75 : vector<8x1xi32> to vector<8x512xi32>
    %77 = arith.cmpi eq, %7, %76 : vector<8x512xi32>
    %78 = arith.extui %77 : vector<8x512xi1> to vector<8x512xi32>
    %79 = arith.sitofp %78 : vector<8x512xi32> to vector<8x512xf32>
    %80 = arith.addf %74, %79 : vector<8x512xf32>
    %81 = vector.extract_strided_slice %6 {offsets = [0, 12], sizes = [8, 1], strides = [1, 1]} : vector<8x16xi32> to vector<8x1xi32>
    %82 = vector.broadcast %81 : vector<8x1xi32> to vector<8x512xi32>
    %83 = arith.cmpi eq, %7, %82 : vector<8x512xi32>
    %84 = arith.extui %83 : vector<8x512xi1> to vector<8x512xi32>
    %85 = arith.sitofp %84 : vector<8x512xi32> to vector<8x512xf32>
    %86 = arith.addf %80, %85 : vector<8x512xf32>
    %87 = vector.extract_strided_slice %6 {offsets = [0, 13], sizes = [8, 1], strides = [1, 1]} : vector<8x16xi32> to vector<8x1xi32>
    %88 = vector.broadcast %87 : vector<8x1xi32> to vector<8x512xi32>
    %89 = arith.cmpi eq, %7, %88 : vector<8x512xi32>
    %90 = arith.extui %89 : vector<8x512xi1> to vector<8x512xi32>
    %91 = arith.sitofp %90 : vector<8x512xi32> to vector<8x512xf32>
    %92 = arith.addf %86, %91 : vector<8x512xf32>
    %93 = vector.extract_strided_slice %6 {offsets = [0, 14], sizes = [8, 1], strides = [1, 1]} : vector<8x16xi32> to vector<8x1xi32>
    %94 = vector.broadcast %93 : vector<8x1xi32> to vector<8x512xi32>
    %95 = arith.cmpi eq, %7, %94 : vector<8x512xi32>
    %96 = arith.extui %95 : vector<8x512xi1> to vector<8x512xi32>
    %97 = arith.sitofp %96 : vector<8x512xi32> to vector<8x512xf32>
    %98 = arith.addf %92, %97 : vector<8x512xf32>
    %99 = vector.extract_strided_slice %6 {offsets = [0, 15], sizes = [8, 1], strides = [1, 1]} : vector<8x16xi32> to vector<8x1xi32>
    %100 = vector.broadcast %99 : vector<8x1xi32> to vector<8x512xi32>
    %101 = arith.cmpi eq, %7, %100 : vector<8x512xi32>
    %102 = arith.extui %101 : vector<8x512xi1> to vector<8x512xi32>
    %103 = arith.sitofp %102 : vector<8x512xi32> to vector<8x512xf32>
    %104 = arith.addf %98, %103 : vector<8x512xf32>
    %c0_2 = arith.constant 0 : index
    %c0_3 = arith.constant 0 : index
    %105 = vector.load %arg7[%c0_2, %c0_3] : memref<8x384xf32, #tpu.memory_space<vmem>>, vector<8x384xf32>
    %106 = arith.truncf %104 : vector<8x512xf32> to vector<8x512xbf16>
    %c0_4 = arith.constant 0 : index
    %c0_5 = arith.constant 0 : index
    %107 = vector.load %arg3[%c0_4, %c0_5] : memref<512x384xbf16, #tpu.memory_space<vmem>>, vector<512x384xbf16>
    %cst_6 = arith.constant dense<0.000000e+00> : vector<8x384xf32>
    %108 = tpu.matmul %106, %107, %cst_6 {dimension_numbers = #tpu.dot_dimension_numbers<[1], [0], [0], [1], [0, 0, 1, 1], [], []>} : vector<8x512xbf16>, vector<512x384xbf16>, vector<8x384xf32> -> vector<8x384xf32>
    %109 = arith.addf %105, %108 : vector<8x384xf32>
    %c0_7 = arith.constant 0 : index
    %c0_8 = arith.constant 0 : index
    %110 = vector.load %arg7[%c0_7, %c0_8] : memref<8x384xf32, #tpu.memory_space<vmem>>, vector<8x384xf32>
    tpu.vector_store %arg7[%c0_7, %c0_8], %109 {strides = array<i32>} : memref<8x384xf32, #tpu.memory_space<vmem>>, vector<8x384xf32>,
    %c1_i32 = arith.constant 1 : i32
    %111 = arith.cmpi eq, %arg1, %c1_i32 : i32
    %112 = arith.extui %111 : i1 to i32
    %c0_i32_9 = arith.constant 0 : i32
    %113 = arith.cmpi ne, %112, %c0_i32_9 : i32
    scf.if %113 {
      %c0_10 = arith.constant 0 : index
      %c0_11 = arith.constant 0 : index
      %114 = vector.load %arg7[%c0_10, %c0_11] : memref<8x384xf32, #tpu.memory_space<vmem>>, vector<8x384xf32>
      %cst_12 = arith.constant 6.250000e-02 : f32
      %115 = vector.broadcast %cst_12 : f32 to vector<8x384xf32>
      %116 = arith.mulf %114, %115 : vector<8x384xf32>
      %c0_13 = arith.constant 0 : index
      %c0_14 = arith.constant 0 : index
      %117 = vector.load %arg4[%c0_13, %c0_14] : memref<384x128xf32, #tpu.memory_space<vmem>>, vector<384x128xf32>
      %cst_15 = arith.constant dense<0.000000e+00> : vector<8x128xf32>
      %118 = tpu.matmul %116, %117, %cst_15 {dimension_numbers = #tpu.dot_dimension_numbers<[1], [0], [0], [1], [0, 0, 1, 1], [], []>} : vector<8x384xf32>, vector<384x128xf32>, vector<8x128xf32> -> vector<8x128xf32>
      %c0_16 = arith.constant 0 : index
      %c0_17 = arith.constant 0 : index
      %119 = vector.load %arg5[%c0_16, %c0_17] : memref<1x128xf32, #tpu.memory_space<vmem>>, vector<1x128xf32>
      %120 = vector.broadcast %119 : vector<1x128xf32> to vector<8x128xf32>
      %121 = arith.addf %118, %120 : vector<8x128xf32>
      %c0_18 = arith.constant 0 : index
      %c0_19 = arith.constant 0 : index
      %122 = vector.load %arg6[%c0_18, %c0_19] : memref<8x128xf32, #tpu.memory_space<vmem>>, vector<8x128xf32>
      tpu.vector_store %arg6[%c0_18, %c0_19], %121 {strides = array<i32>} : memref<8x128xf32, #tpu.memory_space<vmem>>, vector<8x128xf32>,
    } else {
    }
    return
  }
  func.func @transform_0(%arg0: i32, %arg1: i32) -> (i32, i32) {
    %c0_i32 = arith.constant 0 : i32
    %c0_i32_0 = arith.constant 0 : i32
    return %arg0, %c0_i32 : i32, i32
  }
  func.func @transform_1(%arg0: i32, %arg1: i32) -> (i32, i32) {
    %c0_i32 = arith.constant 0 : i32
    %c0_i32_0 = arith.constant 0 : i32
    return %arg1, %c0_i32 : i32, i32
  }
  func.func @transform_2(%arg0: i32, %arg1: i32) -> (i32, i32) {
    %c0_i32 = arith.constant 0 : i32
    %c0_i32_0 = arith.constant 0 : i32
    %c0_i32_1 = arith.constant 0 : i32
    return %c0_i32, %c0_i32_0 : i32, i32
  }
  func.func @transform_3(%arg0: i32, %arg1: i32) -> (i32, i32) {
    %c0_i32 = arith.constant 0 : i32
    %c0_i32_0 = arith.constant 0 : i32
    %c0_i32_1 = arith.constant 0 : i32
    return %c0_i32, %c0_i32_0 : i32, i32
  }
  func.func @transform_4(%arg0: i32, %arg1: i32) -> (i32, i32) {
    %c0_i32 = arith.constant 0 : i32
    %c0_i32_0 = arith.constant 0 : i32
    return %arg0, %c0_i32 : i32, i32
  }
}

</mosaic_0001>

<llo_original>
// kernel: tpu_custom_call.1
$region0: #{tpu_custom_call.1}
  #allocation0 [shape = 'u32[]', space=smem, size = 0x4, offset = 0x4, fixed_abs, tag = 'smem constant byte address 0x4 - core index']
  #allocation1 [shape = 'u32[144,128]{1,0:T(1,128)}', space=vmem, size = 0x12000, scoped, tag = 'internal scratch']
  #allocation2 [shape = 'f32[8,384]{1,0:T(8,128)}', space=vmem, size = 0x3000, scoped, tag = 'scratch operand']
  %s0 = inlined_call_operand.hbm [shape: s32[8,16], index: 0, kind: input, shape index: {}]
  %s1 = inlined_call_operand.hbm [shape: bf16[1024,384], index: 1, kind: input, shape index: {}]
  %s2 = inlined_call_operand.hbm [shape: f32[384,128], index: 2, kind: input, shape index: {}]
  %s3 = inlined_call_operand.vmem [shape: f32[1,128], index: 3, kind: input, shape index: {}]
  %s4 = inlined_call_operand.hbm [shape: f32[8,128], index: 4, kind: output, shape index: {}]
  %s5 = sld [smem:[#allocation0]]
  $region69: #{tpu_custom_call.1} parent=0
    _
  %s7 = ssub.s32 1, %s5
  %s8 = scalar_select 0, %s7, %s5
  $region1: #{tpu_custom_call.1} parent=0
    #allocation3 [shape = 'u8[4096]{0}', space=vmem, size = 0x1000, scoped, tag = 'input window, operand 0, single buffered']
    #allocation4 [shape = 's32[2]{0}', space=sflag, size = 0x8, scoped, tag = 'scoped memory for tpu_custom_call.1']
    #allocation5 [shape = 's32[2]{0}', space=sflag, size = 0x8, scoped, tag = 'scoped memory for tpu_custom_call.1']
    #allocation6 [shape = 'u8[786432]{0}', space=vmem, size = 0xc0000, scoped, tag = 'input window, operand 1']
    #allocation7 [shape = 's32[2]{0}', space=sflag, size = 0x8, scoped, tag = 'scoped memory for tpu_custom_call.1']
    #allocation8 [shape = 'u8[196608]{0}', space=vmem, size = 0x30000, scoped, tag = 'input window, operand 2, single buffered']
    #allocation9 [shape = 'u8[4096]{0}', space=vmem, size = 0x1000, scoped, tag = 'output window, operand 0, single buffered']
    %9 = vsyncpa [#allocation4], 0
    %10 = vsyncpa [#allocation7], 0
    %s11 = scalar_lea.sflag [#allocation7], 1
    %12 = vsyncpa %s11, 0
    %13 = vsyncpa [#allocation5], 0
    loop: start=0, step=1, limit=4
    $region2: #{tpu_custom_call.1} parent=1 // loop_pre_header
      _
    $region3: #{tpu_custom_call.1} parent=1 // loop_header
      %s15 = sphi 0, %s19
      %p16 = scmp.ge.s32.totalorder %s15, 4
      %s22 = sphi 0, %s34
      %s23 = sphi 0, %s30
      %s24 = sphi 0, %s22
      %s25 = sphi 0, %s23
      %s26 = sphi 0, %s24
      %s27 = sphi 0, %s25
      %s37 = sphi 0, %s39
      %s40 = sphi 0, %s37
      %s41 = sphi 0, %s40
      %s57 = sphi 0, %s41
      %s63 = sphi 0, %s65
      %s66 = sphi 0, %s63
      %s67 = sphi 0, %s66
      %s83 = sphi 0, %s67
      %s87 = sphi 0, %s87
      %s89 = sphi 0, %s87
      %s90 = sphi 0, %s89
      %s104 = sphi 0, %s90
      %s108 = sphi 0, %s108
      %s110 = sphi 0, %s108
      %s111 = sphi 0, %s110
      %s125 = sphi 0, %s111
      %s131 = sphi 0, %s133
      %s134 = sphi 0, %s131
      %s135 = sphi 0, %s134
      %s151 = sphi 0, %s135
    $region4: #{tpu_custom_call.1} parent=1 // loop_header_branch
      %18 = sbr.rel (%p16) target = $region8
    $region5: #{tpu_custom_call.1} parent=1 // loop_body
      %s20 = ssub.s32 %s15, 1
      %s21 = ssub.s32 %s15, 2
      %s28 = sadd.s32 1, %s23
      %p29 = scmp.ge.s32.totalorder %s28, 2
      %s30 = scalar_select %p29, 0, %s28
      %s31 = sadd.s32 1, %s22
      %s32 = scalar_select %p29, %s31, %s22
      %p33 = scmp.ge.s32.totalorder %s32, 1
      %s34 = scalar_select %p33, 0, %s32
      %s35 = ssub.s32 %s22, %s34
      %p36 = scmp.eq.s32.totalorder %s35, 0
      %s38 = sadd.s32 %s37, 1
      %s39 = scalar_select %p36, %s37, %s38
      %p42 = pneg %p36
      %p43 = scmp.eq.s32.totalorder %s15, 1
      %p44 = por %p42, %p43
      %p45 = scmp.ne.s32.totalorder %s37, %s40
      %p46 = scmp.eq.s32.totalorder %s15, 0
      %p47 = por %p45, %p46
      %p48 = scmp.ne.s32.totalorder %s37, %s40
      %p49 = scmp.eq.s32.totalorder %s20, 1
      %p50 = por %p48, %p49
      %p51 = scmp.ne.s32.totalorder %s40, %s41
      %p52 = scmp.eq.s32.totalorder %s20, 0
      %p53 = por %p51, %p52
      %p54 = scmp.ne.s32.totalorder %s40, %s41
      %p55 = scmp.eq.s32.totalorder %s21, 1
      %p56 = por %p54, %p55
      %p58 = scmp.ne.s32.totalorder %s41, %s57
      %p59 = scmp.eq.s32.totalorder %s21, 0
      %p60 = por %p58, %p59
      %s61 = ssub.s32 %s23, %s30
      %p62 = scmp.eq.s32.totalorder %s61, 0
      %s64 = sadd.s32 %s63, 1
      %s65 = scalar_select %p62, %s63, %s64
      %p68 = pneg %p62
      %p69 = scmp.eq.s32.totalorder %s15, 1
      %p70 = por %p68, %p69
      %p71 = scmp.ne.s32.totalorder %s63, %s66
      %p72 = scmp.eq.s32.totalorder %s15, 0
      %p73 = por %p71, %p72
      %p74 = scmp.ne.s32.totalorder %s63, %s66
      %p75 = scmp.eq.s32.totalorder %s20, 1
      %p76 = por %p74, %p75
      %p77 = scmp.ne.s32.totalorder %s66, %s67
      %p78 = scmp.eq.s32.totalorder %s20, 0
      %p79 = por %p77, %p78
      %p80 = scmp.ne.s32.totalorder %s66, %s67
      %p81 = scmp.eq.s32.totalorder %s21, 1
      %p82 = por %p80, %p81
      %p84 = scmp.ne.s32.totalorder %s67, %s83
      %p85 = scmp.eq.s32.totalorder %s21, 0
      %p86 = por %p84, %p85
      %s88 = sadd.s32 %s87, 1
      %p91 = scmp.eq.s32.totalorder %s15, 1
      %p92 = scmp.ne.s32.totalorder %s87, %s89
      %p93 = scmp.eq.s32.totalorder %s15, 0
      %p94 = por %p92, %p93
      %p95 = scmp.ne.s32.totalorder %s87, %s89
      %p96 = scmp.eq.s32.totalorder %s20, 1
      %p97 = por %p95, %p96
      %p98 = scmp.ne.s32.totalorder %s89, %s90
      %p99 = scmp.eq.s32.totalorder %s20, 0
      %p100 = por %p98, %p99
      %p101 = scmp.ne.s32.totalorder %s89, %s90
      %p102 = scmp.eq.s32.totalorder %s21, 1
      %p103 = por %p101, %p102
      %p105 = scmp.ne.s32.totalorder %s90, %s104
      %p106 = scmp.eq.s32.totalorder %s21, 0
      %p107 = por %p105, %p106
      %s109 = sadd.s32 %s108, 1
      %p112 = scmp.eq.s32.totalorder %s15, 1
      %p113 = scmp.ne.s32.totalorder %s108, %s110
      %p114 = scmp.eq.s32.totalorder %s15, 0
      %p115 = por %p113, %p114
      %p116 = scmp.ne.s32.totalorder %s108, %s110
      %p117 = scmp.eq.s32.totalorder %s20, 1
      %p118 = por %p116, %p117
      %p119 = scmp.ne.s32.totalorder %s110, %s111
      %p120 = scmp.eq.s32.totalorder %s20, 0
      %p121 = por %p119, %p120
      %p122 = scmp.ne.s32.totalorder %s110, %s111
      %p123 = scmp.eq.s32.totalorder %s21, 1
      %p124 = por %p122, %p123
      %p126 = scmp.ne.s32.totalorder %s111, %s125
      %p127 = scmp.eq.s32.totalorder %s21, 0
      %p128 = por %p126, %p127
      %s129 = ssub.s32 %s22, %s34
      %p130 = scmp.eq.s32.totalorder %s129, 0
      %s132 = sadd.s32 %s131, 1
      %s133 = scalar_select %p130, %s131, %s132
      %p136 = pneg %p130
      %p137 = scmp.eq.s32.totalorder %s15, 1
      %p138 = por %p136, %p137
      %p139 = scmp.ne.s32.totalorder %s131, %s134
      %p140 = scmp.eq.s32.totalorder %s15, 0
      %p141 = por %p139, %p140
      %p142 = scmp.ne.s32.totalorder %s131, %s134
      %p143 = scmp.eq.s32.totalorder %s20, 1
      %p144 = por %p142, %p143
      %p145 = scmp.ne.s32.totalorder %s134, %s135
      %p146 = scmp.eq.s32.totalorder %s20, 0
      %p147 = por %p145, %p146
      %p148 = scmp.ne.s32.totalorder %s134, %s135
      %p149 = scmp.eq.s32.totalorder %s21, 1
      %p150 = por %p148, %p149
      %p152 = scmp.ne.s32.totalorder %s135, %s151
      %p153 = scmp.eq.s32.totalorder %s21, 0
      %p154 = por %p152, %p153
      %p155 = scmp.le.s32.totalorder 1, %s15
      %p156 = scmp.lt.s32.totalorder %s15, 3
      %p157 = pnand %p155, %p156
      %p158 = pneg %p157
      // Predicated region
      $region9: #{tpu_custom_call.1} parent=5 // pred_check
        _
      $region10: #{tpu_custom_call.1} parent=5 // pred_check_branch
        %160 = sbr.rel (%p157) target = $region12
      $region11: #{tpu_custom_call.1} parent=5 // pred_region
        %s161 = ssub.s32 %s15, 1
        // Predicated region
        $region13: #{tpu_custom_call.1} parent=11 // pred_check
          %p162 = pneg %p53
        $region14: #{tpu_custom_call.1} parent=11 // pred_check_branch
          %164 = sbr.rel (%p162) target = $region16
        $region15: #{tpu_custom_call.1} parent=11 // pred_region
          %s166 = ssub.s32 128, 128
          %167 = vsyncadd [#allocation4], %s166
          %s168 = smul.addr %s24, 128
          %s169 = scalar_lea.hbm %s0, %s168
          %s171 = sshll.u32 [#allocation3], 4
          %s172 = int_to_ptr.vmem [resolvable:$true] %s171
          %174 = dma.hbm_to_vmem [thread:$0]  %s169, 128, %s172, [#allocation4]
        $region16: #{tpu_custom_call.1} parent=11 // pred_fallthru
          _
        // Predicated region
        $region17: #{tpu_custom_call.1} parent=11 // pred_check
          %p175 = pneg %p100
        $region18: #{tpu_custom_call.1} parent=11 // pred_check_branch
          %177 = sbr.rel (%p175) target = $region20
        $region19: #{tpu_custom_call.1} parent=11 // pred_region
          %s179 = ssub.s32 6144, 6144
          %180 = vsyncadd [#allocation7], %s179
          %s181 = sshll.u32 [#allocation8], 4
          %s182 = int_to_ptr.vmem [resolvable:$true] %s181
          %187 = dma.hbm_to_vmem [thread:$0]  %s2, 6144, %s182, [#allocation7], 128, 128, 8
        $region20: #{tpu_custom_call.1} parent=11 // pred_fallthru
          _
        // Predicated region
        $region21: #{tpu_custom_call.1} parent=11 // pred_check
          %p188 = pneg %p121
        $region22: #{tpu_custom_call.1} parent=11 // pred_check_branch
          %190 = sbr.rel (%p188) target = $region24
        $region23: #{tpu_custom_call.1} parent=11 // pred_region
          _
        $region24: #{tpu_custom_call.1} parent=11 // pred_fallthru
          _
      $region12: #{tpu_custom_call.1} parent=5 // pred_fallthru
        _
      %p191 = scmp.lt.s32.totalorder %s15, 2
      // Predicated region
      $region25: #{tpu_custom_call.1} parent=5 // pred_check
        %p192 = pneg %p191
      $region26: #{tpu_custom_call.1} parent=5 // pred_check_branch
        %194 = sbr.rel (%p192) target = $region28
      $region27: #{tpu_custom_call.1} parent=5 // pred_region
        // Predicated region
        $region29: #{tpu_custom_call.1} parent=27 // pred_check
          %p195 = pneg %p73
        $region30: #{tpu_custom_call.1} parent=27 // pred_check_branch
          %197 = sbr.rel (%p195) target = $region32
        $region31: #{tpu_custom_call.1} parent=27 // pred_region
          %s198 = sand.u32 %s15, 1
          %s199 = scalar_lea.sflag [#allocation7], %s198
          %s200 = sand.u32 %s63, 1
          %s201 = smul.addr %s200, 768
          %s202 = scalar_lea.vmem [#allocation6], %s201
          %s203 = smul.u32 64, %s23
          %s205 = ssub.s32 12288, 12288
          %206 = vsyncadd %s199, %s205
          %s207 = smul.addr %s203, 3
          %s208 = smul.addr %s207, 64
          %s209 = scalar_lea.hbm %s1, %s208
          %s210 = sshll.u32 %s202, 4
          %s211 = int_to_ptr.vmem [resolvable:$true] %s210
          %216 = dma.hbm_to_vmem [thread:$0]  %s209, 12288, %s211, %s199, 192, 192, 12
        $region32: #{tpu_custom_call.1} parent=27 // pred_fallthru
          _
      $region28: #{tpu_custom_call.1} parent=5 // pred_fallthru
        _
      %p217 = scmp.le.s32.totalorder 1, %s15
      %p218 = scmp.lt.s32.totalorder %s15, 3
      %p219 = pnand %p217, %p218
      %p220 = pneg %p219
      // Predicated region
      $region33: #{tpu_custom_call.1} parent=5 // pred_check
        _
      $region34: #{tpu_custom_call.1} parent=5 // pred_check_branch
        %222 = sbr.rel (%p219) target = $region36
      $region35: #{tpu_custom_call.1} parent=5 // pred_region
        %s223 = ssub.s32 %s15, 1
        // Predicated region
        $region37: #{tpu_custom_call.1} parent=35 // pred_check
          %p224 = pneg %p53
        $region38: #{tpu_custom_call.1} parent=35 // pred_check_branch
          %226 = sbr.rel (%p224) target = $region40
        $region39: #{tpu_custom_call.1} parent=35 // pred_region
          %227 = dma.done [#allocation4], 128
        $region40: #{tpu_custom_call.1} parent=35 // pred_fallthru
          _
        %s228 = sand.u32 %s20, 1
        %s229 = scalar_lea.sflag [#allocation7], %s228
        %s230 = sand.u32 %s66, 1
        %s231 = smul.addr %s230, 768
        %s232 = scalar_lea.vmem [#allocation6], %s231
        // Predicated region
        $region41: #{tpu_custom_call.1} parent=35 // pred_check
          %p233 = pneg %p79
        $region42: #{tpu_custom_call.1} parent=35 // pred_check_branch
          %235 = sbr.rel (%p233) target = $region44
        $region43: #{tpu_custom_call.1} parent=35 // pred_region
          %236 = dma.done %s229, 12288
        $region44: #{tpu_custom_call.1} parent=35 // pred_fallthru
          _
        // Predicated region
        $region45: #{tpu_custom_call.1} parent=35 // pred_check
          %p237 = pneg %p100
        $region46: #{tpu_custom_call.1} parent=35 // pred_check_branch
          %239 = sbr.rel (%p237) target = $region48
        $region47: #{tpu_custom_call.1} parent=35 // pred_region
          %240 = dma.done [#allocation7], 6144
        $region48: #{tpu_custom_call.1} parent=35 // pred_fallthru
          _
        %p241 = pneg %p53
        %p242 = pneg %p50
        %s243 = sand.u32 %s20, 1
        %s244 = scalar_lea.sflag [#allocation7], %s243
        %s245 = sand.u32 %s66, 1
        %s246 = smul.addr %s245, 768
        %s247 = scalar_lea.vmem [#allocation6], %s246
        %p248 = pneg %p79
        %p249 = pneg %p76
        %p250 = pneg %p100
        %p251 = pneg %p97
        %p252 = pneg %p121
        %p253 = pneg %p118
        %p254 = pneg %p147
        %p255 = pneg %p144
        %s256 = smul.u32 64, %s25
        %p258 = scmp.eq.s32.totalorder %s25, 0
        // Predicated region
        $region49: #{tpu_custom_call.1} parent=35 // pred_check
          %p259 = pneg %p258
        $region50: #{tpu_custom_call.1} parent=35 // pred_check_branch
          %261 = sbr.rel (%p259) target = $region52
        $region51: #{tpu_custom_call.1} parent=35 // pred_region
          %262 = vst [vmem:[#allocation2] sm:$0xff] 0.0
          %263 = vst [vmem:[#allocation2 + $0x8] sm:$0xff] 0.0
          %264 = vst [vmem:[#allocation2 + $0x10] sm:$0xff] 0.0
        $region52: #{tpu_custom_call.1} parent=35 // pred_fallthru
          _
        %v265 = vld [vmem:[#allocation3] sm:$0xff]
        %s266 = smul.u32 %s25, 512
        %v267 = vstv %s266
        %v268 = vsub.s32 %v265, %v267
        %v269 = vlaneseq
        %v270 = vand.u32 %v269, 127
        %v271 = vadd.s32 %v270, 128
        %v272 = vadd.s32 %v270, 256
        %v273 = vadd.s32 %v270, 384
        %274 = vset.pattern.permute.xlu0 0
        %275 = vperm.xlu0 %274, %v268
        %v276 = vpop.permute.xlu0 %275
        %vm277 = vcmp.eq.s32.totalorder %v270, %v276
        %vm278 = vcmp.eq.s32.totalorder %v271, %v276
        %vm279 = vcmp.eq.s32.totalorder %v272, %v276
        %vm280 = vcmp.eq.s32.totalorder %v273, %v276
        %v281 = vsel %vm277, 1, 0
        %v282 = vsel %vm278, 1, 0
        %v283 = vsel %vm279, 1, 0
        %v284 = vsel %vm280, 1, 0
        %v285 = vcvt.s32.f32 %v281
        %v286 = vcvt.s32.f32 %v282
        %v287 = vcvt.s32.f32 %v283
        %v288 = vcvt.s32.f32 %v284
        %v289 = vadd.f32 %v285, 0.0
        %v290 = vadd.f32 %v286, 0.0
        %v291 = vadd.f32 %v287, 0.0
        %v292 = vadd.f32 %v288, 0.0
        %293 = vset.pattern.permute.xlu0 1
        %294 = vperm.xlu0 %293, %v268
        %v295 = vpop.permute.xlu0 %294
        %vm296 = vcmp.eq.s32.totalorder %v270, %v295
        %vm297 = vcmp.eq.s32.totalorder %v271, %v295
        %vm298 = vcmp.eq.s32.totalorder %v272, %v295
        %vm299 = vcmp.eq.s32.totalorder %v273, %v295
        %v300 = vsel %vm296, 1, 0
        %v301 = vsel %vm297, 1, 0
        %v302 = vsel %vm298, 1, 0
        %v303 = vsel %vm299, 1, 0
        %v304 = vcvt.s32.f32 %v300
        %v305 = vcvt.s32.f32 %v301
        %v306 = vcvt.s32.f32 %v302
        %v307 = vcvt.s32.f32 %v303
        %v308 = vadd.f32 %v289, %v304
        %v309 = vadd.f32 %v290, %v305
        %v310 = vadd.f32 %v291, %v306
        %v311 = vadd.f32 %v292, %v307
        %312 = vset.pattern.permute.xlu0 2
        %313 = vperm.xlu0 %312, %v268
        %v314 = vpop.permute.xlu0 %313
        %vm315 = vcmp.eq.s32.totalorder %v270, %v314
        %vm316 = vcmp.eq.s32.totalorder %v271, %v314
        %vm317 = vcmp.eq.s32.totalorder %v272, %v314
        %vm318 = vcmp.eq.s32.totalorder %v273, %v314
        %v319 = vsel %vm315, 1, 0
        %v320 = vsel %vm316, 1, 0
        %v321 = vsel %vm317, 1, 0
        %v322 = vsel %vm318, 1, 0
        %v323 = vcvt.s32.f32 %v319
        %v324 = vcvt.s32.f32 %v320
        %v325 = vcvt.s32.f32 %v321
        %v326 = vcvt.s32.f32 %v322
        %v327 = vadd.f32 %v308, %v323
        %v328 = vadd.f32 %v309, %v324
        %v329 = vadd.f32 %v310, %v325
        %v330 = vadd.f32 %v311, %v326
        %331 = vset.pattern.permute.xlu0 3
        %332 = vperm.xlu0 %331, %v268
        %v333 = vpop.permute.xlu0 %332
        %vm334 = vcmp.eq.s32.totalorder %v270, %v333
        %vm335 = vcmp.eq.s32.totalorder %v271, %v333
        %vm336 = vcmp.eq.s32.totalorder %v272, %v333
        %vm337 = vcmp.eq.s32.totalorder %v273, %v333
        %v338 = vsel %vm334, 1, 0
        %v339 = vsel %vm335, 1, 0
        %v340 = vsel %vm336, 1, 0
        %v341 = vsel %vm337, 1, 0
        %v342 = vcvt.s32.f32 %v338
        %v343 = vcvt.s32.f32 %v339
        %v344 = vcvt.s32.f32 %v340
        %v345 = vcvt.s32.f32 %v341
        %v346 = vadd.f32 %v327, %v342
        %v347 = vadd.f32 %v328, %v343
        %v348 = vadd.f32 %v329, %v344
        %v349 = vadd.f32 %v330, %v345
        %350 = vset.pattern.permute.xlu0 4
        %351 = vperm.xlu0 %350, %v268
        %v352 = vpop.permute.xlu0 %351
        %vm353 = vcmp.eq.s32.totalorder %v270, %v352
        %vm354 = vcmp.eq.s32.totalorder %v271, %v352
        %vm355 = vcmp.eq.s32.totalorder %v272, %v352
        %vm356 = vcmp.eq.s32.totalorder %v273, %v352
        %v357 = vsel %vm353, 1, 0
        %v358 = vsel %vm354, 1, 0
        %v359 = vsel %vm355, 1, 0
        %v360 = vsel %vm356, 1, 0
        %v361 = vcvt.s32.f32 %v357
        %v362 = vcvt.s32.f32 %v358
        %v363 = vcvt.s32.f32 %v359
        %v364 = vcvt.s32.f32 %v360
        %v365 = vadd.f32 %v346, %v361
        %v366 = vadd.f32 %v347, %v362
        %v367 = vadd.f32 %v348, %v363
        %v368 = vadd.f32 %v349, %v364
        %369 = vset.pattern.permute.xlu0 5
        %370 = vperm.xlu0 %369, %v268
        %v371 = vpop.permute.xlu0 %370
        %vm372 = vcmp.eq.s32.totalorder %v270, %v371
        %vm373 = vcmp.eq.s32.totalorder %v271, %v371
        %vm374 = vcmp.eq.s32.totalorder %v272, %v371
        %vm375 = vcmp.eq.s32.totalorder %v273, %v371
        %v376 = vsel %vm372, 1, 0
        %v377 = vsel %vm373, 1, 0
        %v378 = vsel %vm374, 1, 0
        %v379 = vsel %vm375, 1, 0
        %v380 = vcvt.s32.f32 %v376
        %v381 = vcvt.s32.f32 %v377
        %v382 = vcvt.s32.f32 %v378
        %v383 = vcvt.s32.f32 %v379
        %v384 = vadd.f32 %v365, %v380
        %v385 = vadd.f32 %v366, %v381
        %v386 = vadd.f32 %v367, %v382
        %v387 = vadd.f32 %v368, %v383
        %388 = vset.pattern.permute.xlu0 6
        %389 = vperm.xlu0 %388, %v268
        %v390 = vpop.permute.xlu0 %389
        %vm391 = vcmp.eq.s32.totalorder %v270, %v390
        %vm392 = vcmp.eq.s32.totalorder %v271, %v390
        %vm393 = vcmp.eq.s32.totalorder %v272, %v390
        %vm394 = vcmp.eq.s32.totalorder %v273, %v390
        %v395 = vsel %vm391, 1, 0
        %v396 = vsel %vm392, 1, 0
        %v397 = vsel %vm393, 1, 0
        %v398 = vsel %vm394, 1, 0
        %v399 = vcvt.s32.f32 %v395
        %v400 = vcvt.s32.f32 %v396
        %v401 = vcvt.s32.f32 %v397
        %v402 = vcvt.s32.f32 %v398
        %v403 = vadd.f32 %v384, %v399
        %v404 = vadd.f32 %v385, %v400
        %v405 = vadd.f32 %v386, %v401
        %v406 = vadd.f32 %v387, %v402
        %407 = vset.pattern.permute.xlu0 7
        %408 = vperm.xlu0 %407, %v268
        %v409 = vpop.permute.xlu0 %408
        %vm410 = vcmp.eq.s32.totalorder %v270, %v409
        %vm411 = vcmp.eq.s32.totalorder %v271, %v409
        %vm412 = vcmp.eq.s32.totalorder %v272, %v409
        %vm413 = vcmp.eq.s32.totalorder %v273, %v409
        %v414 = vsel %vm410, 1, 0
        %v415 = vsel %vm411, 1, 0
        %v416 = vsel %vm412, 1, 0
        %v417 = vsel %vm413, 1, 0
        %v418 = vcvt.s32.f32 %v414
        %v419 = vcvt.s32.f32 %v415
        %v420 = vcvt.s32.f32 %v416
        %v421 = vcvt.s32.f32 %v417
        %v422 = vadd.f32 %v403, %v418
        %v423 = vadd.f32 %v404, %v419
        %v424 = vadd.f32 %v405, %v420
        %v425 = vadd.f32 %v406, %v421
        %426 = vset.pattern.permute.xlu0 8
        %427 = vperm.xlu0 %426, %v268
        %v428 = vpop.permute.xlu0 %427
        %vm429 = vcmp.eq.s32.totalorder %v270, %v428
        %vm430 = vcmp.eq.s32.totalorder %v271, %v428
        %vm431 = vcmp.eq.s32.totalorder %v272, %v428
        %vm432 = vcmp.eq.s32.totalorder %v273, %v428
        %v433 = vsel %vm429, 1, 0
        %v434 = vsel %vm430, 1, 0
        %v435 = vsel %vm431, 1, 0
        %v436 = vsel %vm432, 1, 0
        %v437 = vcvt.s32.f32 %v433
        %v438 = vcvt.s32.f32 %v434
        %v439 = vcvt.s32.f32 %v435
        %v440 = vcvt.s32.f32 %v436
        %v441 = vadd.f32 %v422, %v437
        %v442 = vadd.f32 %v423, %v438
        %v443 = vadd.f32 %v424, %v439
        %v444 = vadd.f32 %v425, %v440
        %445 = vset.pattern.permute.xlu0 9
        %446 = vperm.xlu0 %445, %v268
        %v447 = vpop.permute.xlu0 %446
        %vm448 = vcmp.eq.s32.totalorder %v270, %v447
        %vm449 = vcmp.eq.s32.totalorder %v271, %v447
        %vm450 = vcmp.eq.s32.totalorder %v272, %v447
        %vm451 = vcmp.eq.s32.totalorder %v273, %v447
        %v452 = vsel %vm448, 1, 0
        %v453 = vsel %vm449, 1, 0
        %v454 = vsel %vm450, 1, 0
        %v455 = vsel %vm451, 1, 0
        %v456 = vcvt.s32.f32 %v452
        %v457 = vcvt.s32.f32 %v453
        %v458 = vcvt.s32.f32 %v454
        %v459 = vcvt.s32.f32 %v455
        %v460 = vadd.f32 %v441, %v456
        %v461 = vadd.f32 %v442, %v457
        %v462 = vadd.f32 %v443, %v458
        %v463 = vadd.f32 %v444, %v459
        %464 = vset.pattern.permute.xlu0 10
        %465 = vperm.xlu0 %464, %v268
        %v466 = vpop.permute.xlu0 %465
        %vm467 = vcmp.eq.s32.totalorder %v270, %v466
        %vm468 = vcmp.eq.s32.totalorder %v271, %v466
        %vm469 = vcmp.eq.s32.totalorder %v272, %v466
        %vm470 = vcmp.eq.s32.totalorder %v273, %v466
        %v471 = vsel %vm467, 1, 0
        %v472 = vsel %vm468, 1, 0
        %v473 = vsel %vm469, 1, 0
        %v474 = vsel %vm470, 1, 0
        %v475 = vcvt.s32.f32 %v471
        %v476 = vcvt.s32.f32 %v472
        %v477 = vcvt.s32.f32 %v473
        %v478 = vcvt.s32.f32 %v474
        %v479 = vadd.f32 %v460, %v475
        %v480 = vadd.f32 %v461, %v476
        %v481 = vadd.f32 %v462, %v477
        %v482 = vadd.f32 %v463, %v478
        %483 = vset.pattern.permute.xlu0 11
        %484 = vperm.xlu0 %483, %v268
        %v485 = vpop.permute.xlu0 %484
        %vm486 = vcmp.eq.s32.totalorder %v270, %v485
        %vm487 = vcmp.eq.s32.totalorder %v271, %v485
        %vm488 = vcmp.eq.s32.totalorder %v272, %v485
        %vm489 = vcmp.eq.s32.totalorder %v273, %v485
        %v490 = vsel %vm486, 1, 0
        %v491 = vsel %vm487, 1, 0
        %v492 = vsel %vm488, 1, 0
        %v493 = vsel %vm489, 1, 0
        %v494 = vcvt.s32.f32 %v490
        %v495 = vcvt.s32.f32 %v491
        %v496 = vcvt.s32.f32 %v492
        %v497 = vcvt.s32.f32 %v493
        %v498 = vadd.f32 %v479, %v494
        %v499 = vadd.f32 %v480, %v495
        %v500 = vadd.f32 %v481, %v496
        %v501 = vadd.f32 %v482, %v497
        %502 = vset.pattern.permute.xlu0 12
        %503 = vperm.xlu0 %502, %v268
        %v504 = vpop.permute.xlu0 %503
        %vm505 = vcmp.eq.s32.totalorder %v270, %v504
        %vm506 = vcmp.eq.s32.totalorder %v271, %v504
        %vm507 = vcmp.eq.s32.totalorder %v272, %v504
        %vm508 = vcmp.eq.s32.totalorder %v273, %v504
        %v509 = vsel %vm505, 1, 0
        %v510 = vsel %vm506, 1, 0
        %v511 = vsel %vm507, 1, 0
        %v512 = vsel %vm508, 1, 0
        %v513 = vcvt.s32.f32 %v509
        %v514 = vcvt.s32.f32 %v510
        %v515 = vcvt.s32.f32 %v511
        %v516 = vcvt.s32.f32 %v512
        %v517 = vadd.f32 %v498, %v513
        %v518 = vadd.f32 %v499, %v514
        %v519 = vadd.f32 %v500, %v515
        %v520 = vadd.f32 %v501, %v516
        %521 = vset.pattern.permute.xlu0 13
        %522 = vperm.xlu0 %521, %v268
        %v523 = vpop.permute.xlu0 %522
        %vm524 = vcmp.eq.s32.totalorder %v270, %v523
        %vm525 = vcmp.eq.s32.totalorder %v271, %v523
        %vm526 = vcmp.eq.s32.totalorder %v272, %v523
        %vm527 = vcmp.eq.s32.totalorder %v273, %v523
        %v528 = vsel %vm524, 1, 0
        %v529 = vsel %vm525, 1, 0
        %v530 = vsel %vm526, 1, 0
        %v531 = vsel %vm527, 1, 0
        %v532 = vcvt.s32.f32 %v528
        %v533 = vcvt.s32.f32 %v529
        %v534 = vcvt.s32.f32 %v530
        %v535 = vcvt.s32.f32 %v531
        %v536 = vadd.f32 %v517, %v532
        %v537 = vadd.f32 %v518, %v533
        %v538 = vadd.f32 %v519, %v534
        %v539 = vadd.f32 %v520, %v535
        %540 = vset.pattern.permute.xlu0 14
        %541 = vperm.xlu0 %540, %v268
        %v542 = vpop.permute.xlu0 %541
        %vm543 = vcmp.eq.s32.totalorder %v270, %v542
        %vm544 = vcmp.eq.s32.totalorder %v271, %v542
        %vm545 = vcmp.eq.s32.totalorder %v272, %v542
        %vm546 = vcmp.eq.s32.totalorder %v273, %v542
        %v547 = vsel %vm543, 1, 0
        %v548 = vsel %vm544, 1, 0
        %v549 = vsel %vm545, 1, 0
        %v550 = vsel %vm546, 1, 0
        %v551 = vcvt.s32.f32 %v547
        %v552 = vcvt.s32.f32 %v548
        %v553 = vcvt.s32.f32 %v549
        %v554 = vcvt.s32.f32 %v550
        %v555 = vadd.f32 %v536, %v551
        %v556 = vadd.f32 %v537, %v552
        %v557 = vadd.f32 %v538, %v553
        %v558 = vadd.f32 %v539, %v554
        %559 = vset.pattern.permute.xlu0 15
        %560 = vperm.xlu0 %559, %v268
        %v561 = vpop.permute.xlu0 %560
        %vm562 = vcmp.eq.s32.totalorder %v270, %v561
        %vm563 = vcmp.eq.s32.totalorder %v271, %v561
        %vm564 = vcmp.eq.s32.totalorder %v272, %v561
        %vm565 = vcmp.eq.s32.totalorder %v273, %v561
        %v566 = vsel %vm562, 1, 0
        %v567 = vsel %vm563, 1, 0
        %v568 = vsel %vm564, 1, 0
        %v569 = vsel %vm565, 1, 0
        %v570 = vcvt.s32.f32 %v566
        %v571 = vcvt.s32.f32 %v567
        %v572 = vcvt.s32.f32 %v568
        %v573 = vcvt.s32.f32 %v569
        %v574 = vadd.f32 %v555, %v570
        %v575 = vadd.f32 %v556, %v571
        %v576 = vadd.f32 %v557, %v572
        %v577 = vadd.f32 %v558, %v573
        %v578 = vld [vmem:[#allocation2] sm:$0xff]
        %v579 = vld [vmem:[#allocation2 + $0x8] sm:$0xff]
        %v580 = vld [vmem:[#allocation2 + $0x10] sm:$0xff]
        %v581 = vpack.c.bf16 %v574, %v574
        %v582 = vpack.c.bf16 %v575, %v575
        %v583 = vpack.c.bf16 %v576, %v576
        %v584 = vpack.c.bf16 %v577, %v577
        %v585 = vld [vmem:[%s232] sm:$0xff]
        %v586 = vld [vmem:[%s232 + $0x8] sm:$0xf]
        %v587 = vld [vmem:[%s232 + $0xc] sm:$0xff]
        %v588 = vld [vmem:[%s232 + $0x14] sm:$0xf]
        %v589 = vld [vmem:[%s232 + $0x18] sm:$0xff]
        %v590 = vld [vmem:[%s232 + $0x20] sm:$0xf]
        %v591 = vld [vmem:[%s232 + $0x24] sm:$0xff]
        %v592 = vld [vmem:[%s232 + $0x2c] sm:$0xf]
        %v593 = vld [vmem:[%s232 + $0x30] sm:$0xff]
        %v594 = vld [vmem:[%s232 + $0x38] sm:$0xf]
        %v595 = vld [vmem:[%s232 + $0x3c] sm:$0xff]
        %v596 = vld [vmem:[%s232 + $0x44] sm:$0xf]
        %v597 = vld [vmem:[%s232 + $0x48] sm:$0xff]
        %v598 = vld [vmem:[%s232 + $0x50] sm:$0xf]
        %v599 = vld [vmem:[%s232 + $0x54] sm:$0xff]
        %v600 = vld [vmem:[%s232 + $0x5c] sm:$0xf]
        %v601 = vld [vmem:[%s232 + $0x60] sm:$0xff]
        %v602 = vld [vmem:[%s232 + $0x68] sm:$0xf]
        %v603 = vld [vmem:[%s232 + $0x6c] sm:$0xff]
        %v604 = vld [vmem:[%s232 + $0x74] sm:$0xf]
        %v605 = vld [vmem:[%s232 + $0x78] sm:$0xff]
        %v606 = vld [vmem:[%s232 + $0x80] sm:$0xf]
        %v607 = vld [vmem:[%s232 + $0x84] sm:$0xff]
        %v608 = vld [vmem:[%s232 + $0x8c] sm:$0xf]
        %v609 = vld [vmem:[%s232 + $0x90] sm:$0xff]
        %v610 = vld [vmem:[%s232 + $0x98] sm:$0xf]
        %v611 = vld [vmem:[%s232 + $0x9c] sm:$0xff]
        %v612 = vld [vmem:[%s232 + $0xa4] sm:$0xf]
        %v613 = vld [vmem:[%s232 + $0xa8] sm:$0xff]
        %v614 = vld [vmem:[%s232 + $0xb0] sm:$0xf]
        %v615 = vld [vmem:[%s232 + $0xb4] sm:$0xff]
        %v616 = vld [vmem:[%s232 + $0xbc] sm:$0xf]
        %v617 = vld [vmem:[%s232 + $0xc0] sm:$0xff]
        %v618 = vld [vmem:[%s232 + $0xc8] sm:$0xf]
        %v619 = vld [vmem:[%s232 + $0xcc] sm:$0xff]
        %v620 = vld [vmem:[%s232 + $0xd4] sm:$0xf]
        %v621 = vld [vmem:[%s232 + $0xd8] sm:$0xff]
        %v622 = vld [vmem:[%s232 + $0xe0] sm:$0xf]
        %v623 = vld [vmem:[%s232 + $0xe4] sm:$0xff]
        %v624 = vld [vmem:[%s232 + $0xec] sm:$0xf]
        %v625 = vld [vmem:[%s232 + $0xf0] sm:$0xff]
        %v626 = vld [vmem:[%s232 + $0xf8] sm:$0xf]
        %v627 = vld [vmem:[%s232 + $0xfc] sm:$0xff]
        %v628 = vld [vmem:[%s232 + $0x104] sm:$0xf]
        %v629 = vld [vmem:[%s232 + $0x108] sm:$0xff]
        %v630 = vld [vmem:[%s232 + $0x110] sm:$0xf]
        %v631 = vld [vmem:[%s232 + $0x114] sm:$0xff]
        %v632 = vld [vmem:[%s232 + $0x11c] sm:$0xf]
        %v633 = vld [vmem:[%s232 + $0x120] sm:$0xff]
        %v634 = vld [vmem:[%s232 + $0x128] sm:$0xf]
        %v635 = vld [vmem:[%s232 + $0x12c] sm:$0xff]
        %v636 = vld [vmem:[%s232 + $0x134] sm:$0xf]
        %v637 = vld [vmem:[%s232 + $0x138] sm:$0xff]
        %v638 = vld [vmem:[%s232 + $0x140] sm:$0xf]
        %v639 = vld [vmem:[%s232 + $0x144] sm:$0xff]
        %v640 = vld [vmem:[%s232 + $0x14c] sm:$0xf]
        %v641 = vld [vmem:[%s232 + $0x150] sm:$0xff]
        %v642 = vld [vmem:[%s232 + $0x158] sm:$0xf]
        %v643 = vld [vmem:[%s232 + $0x15c] sm:$0xff]
        %v644 = vld [vmem:[%s232 + $0x164] sm:$0xf]
        %v645 = vld [vmem:[%s232 + $0x168] sm:$0xff]
        %v646 = vld [vmem:[%s232 + $0x170] sm:$0xf]
        %v647 = vld [vmem:[%s232 + $0x174] sm:$0xff]
        %v648 = vld [vmem:[%s232 + $0x17c] sm:$0xf]
        %v649 = vld [vmem:[%s232 + $0x180] sm:$0xff]
        %v650 = vld [vmem:[%s232 + $0x188] sm:$0xf]
        %v651 = vld [vmem:[%s232 + $0x18c] sm:$0xff]
        %v652 = vld [vmem:[%s232 + $0x194] sm:$0xf]
        %v653 = vld [vmem:[%s232 + $0x198] sm:$0xff]
        %v654 = vld [vmem:[%s232 + $0x1a0] sm:$0xf]
        %v655 = vld [vmem:[%s232 + $0x1a4] sm:$0xff]
        %v656 = vld [vmem:[%s232 + $0x1ac] sm:$0xf]
        %v657 = vld [vmem:[%s232 + $0x1b0] sm:$0xff]
        %v658 = vld [vmem:[%s232 + $0x1b8] sm:$0xf]
        %v659 = vld [vmem:[%s232 + $0x1bc] sm:$0xff]
        %v660 = vld [vmem:[%s232 + $0x1c4] sm:$0xf]
        %v661 = vld [vmem:[%s232 + $0x1c8] sm:$0xff]
        %v662 = vld [vmem:[%s232 + $0x1d0] sm:$0xf]
        %v663 = vld [vmem:[%s232 + $0x1d4] sm:$0xff]
        %v664 = vld [vmem:[%s232 + $0x1dc] sm:$0xf]
        %v665 = vld [vmem:[%s232 + $0x1e0] sm:$0xff]
        %v666 = vld [vmem:[%s232 + $0x1e8] sm:$0xf]
        %v667 = vld [vmem:[%s232 + $0x1ec] sm:$0xff]
        %v668 = vld [vmem:[%s232 + $0x1f4] sm:$0xf]
        %v669 = vld [vmem:[%s232 + $0x1f8] sm:$0xff]
        %v670 = vld [vmem:[%s232 + $0x200] sm:$0xf]
        %v671 = vld [vmem:[%s232 + $0x204] sm:$0xff]
        %v672 = vld [vmem:[%s232 + $0x20c] sm:$0xf]
        %v673 = vld [vmem:[%s232 + $0x210] sm:$0xff]
        %v674 = vld [vmem:[%s232 + $0x218] sm:$0xf]
        %v675 = vld [vmem:[%s232 + $0x21c] sm:$0xff]
        %v676 = vld [vmem:[%s232 + $0x224] sm:$0xf]
        %v677 = vld [vmem:[%s232 + $0x228] sm:$0xff]
        %v678 = vld [vmem:[%s232 + $0x230] sm:$0xf]
        %v679 = vld [vmem:[%s232 + $0x234] sm:$0xff]
        %v680 = vld [vmem:[%s232 + $0x23c] sm:$0xf]
        %v681 = vld [vmem:[%s232 + $0x240] sm:$0xff]
        %v682 = vld [vmem:[%s232 + $0x248] sm:$0xf]
        %v683 = vld [vmem:[%s232 + $0x24c] sm:$0xff]
        %v684 = vld [vmem:[%s232 + $0x254] sm:$0xf]
        %v685 = vld [vmem:[%s232 + $0x258] sm:$0xff]
        %v686 = vld [vmem:[%s232 + $0x260] sm:$0xf]
        %v687 = vld [vmem:[%s232 + $0x264] sm:$0xff]
        %v688 = vld [vmem:[%s232 + $0x26c] sm:$0xf]
        %v689 = vld [vmem:[%s232 + $0x270] sm:$0xff]
        %v690 = vld [vmem:[%s232 + $0x278] sm:$0xf]
        %v691 = vld [vmem:[%s232 + $0x27c] sm:$0xff]
        %v692 = vld [vmem:[%s232 + $0x284] sm:$0xf]
        %v693 = vld [vmem:[%s232 + $0x288] sm:$0xff]
        %v694 = vld [vmem:[%s232 + $0x290] sm:$0xf]
        %v695 = vld [vmem:[%s232 + $0x294] sm:$0xff]
        %v696 = vld [vmem:[%s232 + $0x29c] sm:$0xf]
        %v697 = vld [vmem:[%s232 + $0x2a0] sm:$0xff]
        %v698 = vld [vmem:[%s232 + $0x2a8] sm:$0xf]
        %v699 = vld [vmem:[%s232 + $0x2ac] sm:$0xff]
        %v700 = vld [vmem:[%s232 + $0x2b4] sm:$0xf]
        %v701 = vld [vmem:[%s232 + $0x2b8] sm:$0xff]
        %v702 = vld [vmem:[%s232 + $0x2c0] sm:$0xf]
        %v703 = vld [vmem:[%s232 + $0x2c4] sm:$0xff]
        %v704 = vld [vmem:[%s232 + $0x2cc] sm:$0xf]
        %v705 = vld [vmem:[%s232 + $0x2d0] sm:$0xff]
        %v706 = vld [vmem:[%s232 + $0x2d8] sm:$0xf]
        %v707 = vld [vmem:[%s232 + $0x2dc] sm:$0xff]
        %v708 = vld [vmem:[%s232 + $0x2e4] sm:$0xf]
        %v709 = vld [vmem:[%s232 + $0x2e8] sm:$0xff]
        %v710 = vld [vmem:[%s232 + $0x2f0] sm:$0xf]
        %v711 = vld [vmem:[%s232 + $0x2f4] sm:$0xff]
        %v712 = vld [vmem:[%s232 + $0x2fc] sm:$0xf]
        %v841 = vunpack.c.l.b16 %v585
        %v842 = vunpack.c.h.b16 %v585
        %v843 = vunpack.c.l.b16 %v586
        %v844 = vunpack.c.l.b16 %v587
        %v845 = vunpack.c.h.b16 %v587
        %v846 = vunpack.c.l.b16 %v588
        %v847 = vunpack.c.l.b16 %v589
        %v848 = vunpack.c.h.b16 %v589
        %v849 = vunpack.c.l.b16 %v590
        %v850 = vunpack.c.l.b16 %v591
        %v851 = vunpack.c.h.b16 %v591
        %v852 = vunpack.c.l.b16 %v592
        %v853 = vunpack.c.l.b16 %v593
        %v854 = vunpack.c.h.b16 %v593
        %v855 = vunpack.c.l.b16 %v594
        %v856 = vunpack.c.l.b16 %v595
        %v857 = vunpack.c.h.b16 %v595
        %v858 = vunpack.c.l.b16 %v596
        %v859 = vunpack.c.l.b16 %v597
        %v860 = vunpack.c.h.b16 %v597
        %v861 = vunpack.c.l.b16 %v598
        %v862 = vunpack.c.l.b16 %v599
        %v863 = vunpack.c.h.b16 %v599
        %v864 = vunpack.c.l.b16 %v600
        %v865 = vunpack.c.l.b16 %v601
        %v866 = vunpack.c.h.b16 %v601
        %v867 = vunpack.c.l.b16 %v602
        %v868 = vunpack.c.l.b16 %v603
        %v869 = vunpack.c.h.b16 %v603
        %v870 = vunpack.c.l.b16 %v604
        %v871 = vunpack.c.l.b16 %v605
        %v872 = vunpack.c.h.b16 %v605
        %v873 = vunpack.c.l.b16 %v606
        %v874 = vunpack.c.l.b16 %v607
        %v875 = vunpack.c.h.b16 %v607
        %v876 = vunpack.c.l.b16 %v608
        %v877 = vunpack.c.l.b16 %v609
        %v878 = vunpack.c.h.b16 %v609
        %v879 = vunpack.c.l.b16 %v610
        %v880 = vunpack.c.l.b16 %v611
        %v881 = vunpack.c.h.b16 %v611
        %v882 = vunpack.c.l.b16 %v612
        %v883 = vunpack.c.l.b16 %v613
        %v884 = vunpack.c.h.b16 %v613
        %v885 = vunpack.c.l.b16 %v614
        %v886 = vunpack.c.l.b16 %v615
        %v887 = vunpack.c.h.b16 %v615
        %v888 = vunpack.c.l.b16 %v616
        %v889 = vunpack.c.l.b16 %v617
        %v890 = vunpack.c.h.b16 %v617
        %v891 = vunpack.c.l.b16 %v618
        %v892 = vunpack.c.l.b16 %v619
        %v893 = vunpack.c.h.b16 %v619
        %v894 = vunpack.c.l.b16 %v620
        %v895 = vunpack.c.l.b16 %v621
        %v896 = vunpack.c.h.b16 %v621
        %v897 = vunpack.c.l.b16 %v622
        %v898 = vunpack.c.l.b16 %v623
        %v899 = vunpack.c.h.b16 %v623
        %v900 = vunpack.c.l.b16 %v624
        %v901 = vunpack.c.l.b16 %v625
        %v902 = vunpack.c.h.b16 %v625
        %v903 = vunpack.c.l.b16 %v626
        %v904 = vunpack.c.l.b16 %v627
        %v905 = vunpack.c.h.b16 %v627
        %v906 = vunpack.c.l.b16 %v628
        %v907 = vunpack.c.l.b16 %v629
        %v908 = vunpack.c.h.b16 %v629
        %v909 = vunpack.c.l.b16 %v630
        %v910 = vunpack.c.l.b16 %v631
        %v911 = vunpack.c.h.b16 %v631
        %v912 = vunpack.c.l.b16 %v632
        %v913 = vunpack.c.l.b16 %v633
        %v914 = vunpack.c.h.b16 %v633
        %v915 = vunpack.c.l.b16 %v634
        %v916 = vunpack.c.l.b16 %v635
        %v917 = vunpack.c.h.b16 %v635
        %v918 = vunpack.c.l.b16 %v636
        %v919 = vunpack.c.l.b16 %v637
        %v920 = vunpack.c.h.b16 %v637
        %v921 = vunpack.c.l.b16 %v638
        %v922 = vunpack.c.l.b16 %v639
        %v923 = vunpack.c.h.b16 %v639
        %v924 = vunpack.c.l.b16 %v640
        %v925 = vunpack.c.l.b16 %v641
        %v926 = vunpack.c.h.b16 %v641
        %v927 = vunpack.c.l.b16 %v642
        %v928 = vunpack.c.l.b16 %v643
        %v929 = vunpack.c.h.b16 %v643
        %v930 = vunpack.c.l.b16 %v644
        %v931 = vunpack.c.l.b16 %v645
        %v932 = vunpack.c.h.b16 %v645
        %v933 = vunpack.c.l.b16 %v646
        %v934 = vunpack.c.l.b16 %v647
        %v935 = vunpack.c.h.b16 %v647
        %v936 = vunpack.c.l.b16 %v648
        %v937 = vunpack.c.l.b16 %v649
        %v938 = vunpack.c.h.b16 %v649
        %v939 = vunpack.c.l.b16 %v650
        %v940 = vunpack.c.l.b16 %v651
        %v941 = vunpack.c.h.b16 %v651
        %v942 = vunpack.c.l.b16 %v652
        %v943 = vunpack.c.l.b16 %v653
        %v944 = vunpack.c.h.b16 %v653
        %v945 = vunpack.c.l.b16 %v654
        %v946 = vunpack.c.l.b16 %v655
        %v947 = vunpack.c.h.b16 %v655
        %v948 = vunpack.c.l.b16 %v656
        %v949 = vunpack.c.l.b16 %v657
        %v950 = vunpack.c.h.b16 %v657
        %v951 = vunpack.c.l.b16 %v658
        %v952 = vunpack.c.l.b16 %v659
        %v953 = vunpack.c.h.b16 %v659
        %v954 = vunpack.c.l.b16 %v660
        %v955 = vunpack.c.l.b16 %v661
        %v956 = vunpack.c.h.b16 %v661
        %v957 = vunpack.c.l.b16 %v662
        %v958 = vunpack.c.l.b16 %v663
        %v959 = vunpack.c.h.b16 %v663
        %v960 = vunpack.c.l.b16 %v664
        %v961 = vunpack.c.l.b16 %v665
        %v962 = vunpack.c.h.b16 %v665
        %v963 = vunpack.c.l.b16 %v666
        %v964 = vunpack.c.l.b16 %v667
        %v965 = vunpack.c.h.b16 %v667
        %v966 = vunpack.c.l.b16 %v668
        %v967 = vunpack.c.l.b16 %v669
        %v968 = vunpack.c.h.b16 %v669
        %v969 = vunpack.c.l.b16 %v670
        %v970 = vunpack.c.l.b16 %v671
        %v971 = vunpack.c.h.b16 %v671
        %v972 = vunpack.c.l.b16 %v672
        %v973 = vunpack.c.l.b16 %v673
        %v974 = vunpack.c.h.b16 %v673
        %v975 = vunpack.c.l.b16 %v674
        %v976 = vunpack.c.l.b16 %v675
        %v977 = vunpack.c.h.b16 %v675
        %v978 = vunpack.c.l.b16 %v676
        %v979 = vunpack.c.l.b16 %v677
        %v980 = vunpack.c.h.b16 %v677
        %v981 = vunpack.c.l.b16 %v678
        %v982 = vunpack.c.l.b16 %v679
        %v983 = vunpack.c.h.b16 %v679
        %v984 = vunpack.c.l.b16 %v680
        %v985 = vunpack.c.l.b16 %v681
        %v986 = vunpack.c.h.b16 %v681
        %v987 = vunpack.c.l.b16 %v682
        %v988 = vunpack.c.l.b16 %v683
        %v989 = vunpack.c.h.b16 %v683
        %v990 = vunpack.c.l.b16 %v684
        %v991 = vunpack.c.l.b16 %v685
        %v992 = vunpack.c.h.b16 %v685
        %v993 = vunpack.c.l.b16 %v686
        %v994 = vunpack.c.l.b16 %v687
        %v995 = vunpack.c.h.b16 %v687
        %v996 = vunpack.c.l.b16 %v688
        %v997 = vunpack.c.l.b16 %v689
        %v998 = vunpack.c.h.b16 %v689
        %v999 = vunpack.c.l.b16 %v690
        %v1000 = vunpack.c.l.b16 %v691
        %v1001 = vunpack.c.h.b16 %v691
        %v1002 = vunpack.c.l.b16 %v692
        %v1003 = vunpack.c.l.b16 %v693
        %v1004 = vunpack.c.h.b16 %v693
        %v1005 = vunpack.c.l.b16 %v694
        %v1006 = vunpack.c.l.b16 %v695
        %v1007 = vunpack.c.h.b16 %v695
        %v1008 = vunpack.c.l.b16 %v696
        %v1009 = vunpack.c.l.b16 %v697
        %v1010 = vunpack.c.h.b16 %v697
        %v1011 = vunpack.c.l.b16 %v698
        %v1012 = vunpack.c.l.b16 %v699
        %v1013 = vunpack.c.h.b16 %v699
        %v1014 = vunpack.c.l.b16 %v700
        %v1015 = vunpack.c.l.b16 %v701
        %v1016 = vunpack.c.h.b16 %v701
        %v1017 = vunpack.c.l.b16 %v702
        %v1018 = vunpack.c.l.b16 %v703
        %v1019 = vunpack.c.h.b16 %v703
        %v1020 = vunpack.c.l.b16 %v704
        %v1021 = vunpack.c.l.b16 %v705
        %v1022 = vunpack.c.h.b16 %v705
        %v1023 = vunpack.c.l.b16 %v706
        %v1024 = vunpack.c.l.b16 %v707
        %v1025 = vunpack.c.h.b16 %v707
        %v1026 = vunpack.c.l.b16 %v708
        %v1027 = vunpack.c.l.b16 %v709
        %v1028 = vunpack.c.h.b16 %v709
        %v1029 = vunpack.c.l.b16 %v710
        %v1030 = vunpack.c.l.b16 %v711
        %v1031 = vunpack.c.h.b16 %v711
        %v1032 = vunpack.c.l.b16 %v712
        %v1033 = vpack.c.b16 %v844, %v841
        %v1034 = vpack.c.b16 %v845, %v842
        %v1035 = vpack.c.b16 %v846, %v843
        %v1036 = vpack.c.b16 %v850, %v847
        %v1037 = vpack.c.b16 %v851, %v848
        %v1038 = vpack.c.b16 %v852, %v849
        %v1039 = vpack.c.b16 %v856, %v853
        %v1040 = vpack.c.b16 %v857, %v854
        %v1041 = vpack.c.b16 %v858, %v855
        %v1042 = vpack.c.b16 %v862, %v859
        %v1043 = vpack.c.b16 %v863, %v860
        %v1044 = vpack.c.b16 %v864, %v861
        %v1045 = vpack.c.b16 %v868, %v865
        %v1046 = vpack.c.b16 %v869, %v866
        %v1047 = vpack.c.b16 %v870, %v867
        %v1048 = vpack.c.b16 %v874, %v871
        %v1049 = vpack.c.b16 %v875, %v872
        %v1050 = vpack.c.b16 %v876, %v873
        %v1051 = vpack.c.b16 %v880, %v877
        %v1052 = vpack.c.b16 %v881, %v878
        %v1053 = vpack.c.b16 %v882, %v879
        %v1054 = vpack.c.b16 %v886, %v883
        %v1055 = vpack.c.b16 %v887, %v884
        %v1056 = vpack.c.b16 %v888, %v885
        %v1057 = vpack.c.b16 %v892, %v889
        %v1058 = vpack.c.b16 %v893, %v890
        %v1059 = vpack.c.b16 %v894, %v891
        %v1060 = vpack.c.b16 %v898, %v895
        %v1061 = vpack.c.b16 %v899, %v896
        %v1062 = vpack.c.b16 %v900, %v897
        %v1063 = vpack.c.b16 %v904, %v901
        %v1064 = vpack.c.b16 %v905, %v902
        %v1065 = vpack.c.b16 %v906, %v903
        %v1066 = vpack.c.b16 %v910, %v907
        %v1067 = vpack.c.b16 %v911, %v908
        %v1068 = vpack.c.b16 %v912, %v909
        %v1069 = vpack.c.b16 %v916, %v913
        %v1070 = vpack.c.b16 %v917, %v914
        %v1071 = vpack.c.b16 %v918, %v915
        %v1072 = vpack.c.b16 %v922, %v919
        %v1073 = vpack.c.b16 %v923, %v920
        %v1074 = vpack.c.b16 %v924, %v921
        %v1075 = vpack.c.b16 %v928, %v925
        %v1076 = vpack.c.b16 %v929, %v926
        %v1077 = vpack.c.b16 %v930, %v927
        %v1078 = vpack.c.b16 %v934, %v931
        %v1079 = vpack.c.b16 %v935, %v932
        %v1080 = vpack.c.b16 %v936, %v933
        %v1081 = vpack.c.b16 %v940, %v937
        %v1082 = vpack.c.b16 %v941, %v938
        %v1083 = vpack.c.b16 %v942, %v939
        %v1084 = vpack.c.b16 %v946, %v943
        %v1085 = vpack.c.b16 %v947, %v944
        %v1086 = vpack.c.b16 %v948, %v945
        %v1087 = vpack.c.b16 %v952, %v949
        %v1088 = vpack.c.b16 %v953, %v950
        %v1089 = vpack.c.b16 %v954, %v951
        %v1090 = vpack.c.b16 %v958, %v955
        %v1091 = vpack.c.b16 %v959, %v956
        %v1092 = vpack.c.b16 %v960, %v957
        %v1093 = vpack.c.b16 %v964, %v961
        %v1094 = vpack.c.b16 %v965, %v962
        %v1095 = vpack.c.b16 %v966, %v963
        %v1096 = vpack.c.b16 %v970, %v967
        %v1097 = vpack.c.b16 %v971, %v968
        %v1098 = vpack.c.b16 %v972, %v969
        %v1099 = vpack.c.b16 %v976, %v973
        %v1100 = vpack.c.b16 %v977, %v974
        %v1101 = vpack.c.b16 %v978, %v975
        %v1102 = vpack.c.b16 %v982, %v979
        %v1103 = vpack.c.b16 %v983, %v980
        %v1104 = vpack.c.b16 %v984, %v981
        %v1105 = vpack.c.b16 %v988, %v985
        %v1106 = vpack.c.b16 %v989, %v986
        %v1107 = vpack.c.b16 %v990, %v987
        %v1108 = vpack.c.b16 %v994, %v991
        %v1109 = vpack.c.b16 %v995, %v992
        %v1110 = vpack.c.b16 %v996, %v993
        %v1111 = vpack.c.b16 %v1000, %v997
        %v1112 = vpack.c.b16 %v1001, %v998
        %v1113 = vpack.c.b16 %v1002, %v999
        %v1114 = vpack.c.b16 %v1006, %v1003
        %v1115 = vpack.c.b16 %v1007, %v1004
        %v1116 = vpack.c.b16 %v1008, %v1005
        %v1117 = vpack.c.b16 %v1012, %v1009
        %v1118 = vpack.c.b16 %v1013, %v1010
        %v1119 = vpack.c.b16 %v1014, %v1011
        %v1120 = vpack.c.b16 %v1018, %v1015
        %v1121 = vpack.c.b16 %v1019, %v1016
        %v1122 = vpack.c.b16 %v1020, %v1017
        %v1123 = vpack.c.b16 %v1024, %v1021
        %v1124 = vpack.c.b16 %v1025, %v1022
        %v1125 = vpack.c.b16 %v1026, %v1023
        %v1126 = vpack.c.b16 %v1030, %v1027
        %v1127 = vpack.c.b16 %v1031, %v1028
        %v1128 = vpack.c.b16 %v1032, %v1029
        %1225 = vmatprep.subr.bf16.mxu0 %v1055
        %1226 = vmatpush1.bf16.msra.mxu0 %v1054
        %1227 = vmatprep.subr.bf16.mxu0 %v1052
        %1228 = vmatpush1.bf16.msra.mxu0 %v1051
        %1229 = vmatprep.subr.bf16.mxu0 %v1049
        %1230 = vmatpush1.bf16.msra.mxu0 %v1048
        %1231 = vmatprep.subr.bf16.mxu0 %v1046
        %1232 = vmatpush1.bf16.msra.mxu0 %v1045
        %1233 = vmatprep.subr.bf16.mxu0 %v1043
        %1234 = vmatpush1.bf16.msra.mxu0 %v1042
        %1235 = vmatprep.subr.bf16.mxu0 %v1040
        %1236 = vmatpush1.bf16.msra.mxu0 %v1039
        %1237 = vmatprep.subr.bf16.mxu0 %v1037
        %1238 = vmatpush1.bf16.msra.mxu0 %v1036
        %1239 = vmatprep.subr.bf16.mxu0 %v1034
        %1240 = vmatpush1.bf16.msra.mxu0 %v1033
        %1241 = vmatprep.subr.bf16.mxu0 %v1079
        %1242 = vmatpush2.bf16.msra.mxu0 %v1078
        %1243 = vmatprep.subr.bf16.mxu0 %v1076
        %1244 = vmatpush2.bf16.msra.mxu0 %v1075
        %1245 = vmatprep.subr.bf16.mxu0 %v1073
        %1246 = vmatpush2.bf16.msra.mxu0 %v1072
        %1247 = vmatprep.subr.bf16.mxu0 %v1070
        %1248 = vmatpush2.bf16.msra.mxu0 %v1069
        %1249 = vmatprep.subr.bf16.mxu0 %v1067
        %1250 = vmatpush2.bf16.msra.mxu0 %v1066
        %1251 = vmatprep.subr.bf16.mxu0 %v1064
        %1252 = vmatpush2.bf16.msra.mxu0 %v1063
        %1253 = vmatprep.subr.bf16.mxu0 %v1061
        %1254 = vmatpush2.bf16.msra.mxu0 %v1060
        %1255 = vmatprep.subr.bf16.mxu0 %v1058
        %1256 = vmatpush2.bf16.msra.mxu0 %v1057
        %1257 = vmatprep.mubr.bf16.mxu0 %v582
        %1258 = vmatmul.mubr.bf16.gmra.mxu0 %v581
        %v1259 = vpop.f32.mrf.mxu0
        %v1260 = vadd.f32 0.0, %v1259
        %v1261 = vpop.f32.mrf.mxu0
        %v1262 = vadd.f32 0.0, %v1261
        %v1263 = vpop.f32.mrf.mxu0
        %v1264 = vpop.f32.mrf.mxu0
        %1265 = vdwg.mxu0
        %1266 = vmatprep.subr.bf16.mxu0 %v1103
        %1267 = vmatpush1.bf16.msra.mxu0 %v1102
        %1268 = vmatprep.subr.bf16.mxu0 %v1100
        %1269 = vmatpush1.bf16.msra.mxu0 %v1099
        %1270 = vmatprep.subr.bf16.mxu0 %v1097
        %1271 = vmatpush1.bf16.msra.mxu0 %v1096
        %1272 = vmatprep.subr.bf16.mxu0 %v1094
        %1273 = vmatpush1.bf16.msra.mxu0 %v1093
        %1274 = vmatprep.subr.bf16.mxu0 %v1091
        %1275 = vmatpush1.bf16.msra.mxu0 %v1090
        %1276 = vmatprep.subr.bf16.mxu0 %v1088
        %1277 = vmatpush1.bf16.msra.mxu0 %v1087
        %1278 = vmatprep.subr.bf16.mxu0 %v1085
        %1279 = vmatpush1.bf16.msra.mxu0 %v1084
        %1280 = vmatprep.subr.bf16.mxu0 %v1082
        %1281 = vmatpush1.bf16.msra.mxu0 %v1081
        %1282 = vmatprep.subr.bf16.mxu0 %v1127
        %1283 = vmatpush2.bf16.msra.mxu0 %v1126
        %1284 = vmatprep.subr.bf16.mxu0 %v1124
        %1285 = vmatpush2.bf16.msra.mxu0 %v1123
        %1286 = vmatprep.subr.bf16.mxu0 %v1121
        %1287 = vmatpush2.bf16.msra.mxu0 %v1120
        %1288 = vmatprep.subr.bf16.mxu0 %v1118
        %1289 = vmatpush2.bf16.msra.mxu0 %v1117
        %1290 = vmatprep.subr.bf16.mxu0 %v1115
        %1291 = vmatpush2.bf16.msra.mxu0 %v1114
        %1292 = vmatprep.subr.bf16.mxu0 %v1112
        %1293 = vmatpush2.bf16.msra.mxu0 %v1111
        %1294 = vmatprep.subr.bf16.mxu0 %v1109
        %1295 = vmatpush2.bf16.msra.mxu0 %v1108
        %1296 = vmatprep.subr.bf16.mxu0 %v1106
        %1297 = vmatpush2.bf16.msra.mxu0 %v1105
        %1298 = vmatprep.mubr.bf16.mxu0 %v584
        %1299 = vmatmul.mubr.bf16.gmra.mxu0 %v583
        %v1300 = vpop.f32.mrf.mxu0
        %v1301 = vadd.f32 %v1260, %v1300
        %v1302 = vpop.f32.mrf.mxu0
        %v1303 = vadd.f32 %v1262, %v1302
        %v1304 = vpop.f32.mrf.mxu0
        %v1305 = vpop.f32.mrf.mxu0
        %1306 = vdwg.mxu0
        %1307 = vmatprep.subr.bf16.mxu0 0
        %1308 = vmatpush1.bf16.msra.mxu0 %v1056
        %1309 = vmatprep.subr.bf16.mxu0 0
        %1310 = vmatpush1.bf16.msra.mxu0 %v1053
        %1311 = vmatprep.subr.bf16.mxu0 0
        %1312 = vmatpush1.bf16.msra.mxu0 %v1050
        %1313 = vmatprep.subr.bf16.mxu0 0
        %1314 = vmatpush1.bf16.msra.mxu0 %v1047
        %1315 = vmatprep.subr.bf16.mxu0 0
        %1316 = vmatpush1.bf16.msra.mxu0 %v1044
        %1317 = vmatprep.subr.bf16.mxu0 0
        %1318 = vmatpush1.bf16.msra.mxu0 %v1041
        %1319 = vmatprep.subr.bf16.mxu0 0
        %1320 = vmatpush1.bf16.msra.mxu0 %v1038
        %1321 = vmatprep.subr.bf16.mxu0 0
        %1322 = vmatpush1.bf16.msra.mxu0 %v1035
        %1323 = vmatprep.subr.bf16.mxu0 0
        %1324 = vmatpush2.bf16.msra.mxu0 %v1080
        %1325 = vmatprep.subr.bf16.mxu0 0
        %1326 = vmatpush2.bf16.msra.mxu0 %v1077
        %1327 = vmatprep.subr.bf16.mxu0 0
        %1328 = vmatpush2.bf16.msra.mxu0 %v1074
        %1329 = vmatprep.subr.bf16.mxu0 0
        %1330 = vmatpush2.bf16.msra.mxu0 %v1071
        %1331 = vmatprep.subr.bf16.mxu0 0
        %1332 = vmatpush2.bf16.msra.mxu0 %v1068
        %1333 = vmatprep.subr.bf16.mxu0 0
        %1334 = vmatpush2.bf16.msra.mxu0 %v1065
        %1335 = vmatprep.subr.bf16.mxu0 0
        %1336 = vmatpush2.bf16.msra.mxu0 %v1062
        %1337 = vmatprep.subr.bf16.mxu0 0
        %1338 = vmatpush2.bf16.msra.mxu0 %v1059
        %1339 = vmatprep.mubr.bf16.mxu0 %v582
        %1340 = vmatmul.mubr.bf16.gmra.mxu0 %v581
        %v1341 = vpop.f32.mrf.mxu0
        %v1342 = vadd.f32 0.0, %v1341
        %v1343 = vpop.f32.mrf.mxu0
        %v1344 = vpop.f32.mrf.mxu0
        %v1345 = vpop.f32.mrf.mxu0
        %1346 = vdwg.mxu0
        %1347 = vmatprep.subr.bf16.mxu0 0
        %1348 = vmatpush1.bf16.msra.mxu0 %v1104
        %1349 = vmatprep.subr.bf16.mxu0 0
        %1350 = vmatpush1.bf16.msra.mxu0 %v1101
        %1351 = vmatprep.subr.bf16.mxu0 0
        %1352 = vmatpush1.bf16.msra.mxu0 %v1098
        %1353 = vmatprep.subr.bf16.mxu0 0
        %1354 = vmatpush1.bf16.msra.mxu0 %v1095
        %1355 = vmatprep.subr.bf16.mxu0 0
        %1356 = vmatpush1.bf16.msra.mxu0 %v1092
        %1357 = vmatprep.subr.bf16.mxu0 0
        %1358 = vmatpush1.bf16.msra.mxu0 %v1089
        %1359 = vmatprep.subr.bf16.mxu0 0
        %1360 = vmatpush1.bf16.msra.mxu0 %v1086
        %1361 = vmatprep.subr.bf16.mxu0 0
        %1362 = vmatpush1.bf16.msra.mxu0 %v1083
        %1363 = vmatprep.subr.bf16.mxu0 0
        %1364 = vmatpush2.bf16.msra.mxu0 %v1128
        %1365 = vmatprep.subr.bf16.mxu0 0
        %1366 = vmatpush2.bf16.msra.mxu0 %v1125
        %1367 = vmatprep.subr.bf16.mxu0 0
        %1368 = vmatpush2.bf16.msra.mxu0 %v1122
        %1369 = vmatprep.subr.bf16.mxu0 0
        %1370 = vmatpush2.bf16.msra.mxu0 %v1119
        %1371 = vmatprep.subr.bf16.mxu0 0
        %1372 = vmatpush2.bf16.msra.mxu0 %v1116
        %1373 = vmatprep.subr.bf16.mxu0 0
        %1374 = vmatpush2.bf16.msra.mxu0 %v1113
        %1375 = vmatprep.subr.bf16.mxu0 0
        %1376 = vmatpush2.bf16.msra.mxu0 %v1110
        %1377 = vmatprep.subr.bf16.mxu0 0
        %1378 = vmatpush2.bf16.msra.mxu0 %v1107
        %1379 = vmatprep.mubr.bf16.mxu0 %v584
        %1380 = vmatmul.mubr.bf16.gmra.mxu0 %v583
        %v1381 = vpop.f32.mrf.mxu0
        %v1382 = vadd.f32 %v1342, %v1381
        %v1383 = vpop.f32.mrf.mxu0
        %v1384 = vpop.f32.mrf.mxu0
        %v1385 = vpop.f32.mrf.mxu0
        %1386 = vdwg.mxu0
        %v1387 = vadd.f32 %v578, %v1301
        %v1388 = vadd.f32 %v579, %v1303
        %v1389 = vadd.f32 %v580, %v1382
        %1390 = vst [vmem:[#allocation2] sm:$0xff] %v1387
        %1391 = vst [vmem:[#allocation2 + $0x8] sm:$0xff] %v1388
        %1392 = vst [vmem:[#allocation2 + $0x10] sm:$0xff] %v1389
        %p1393 = scmp.eq.s32.totalorder %s25, 1
        // Predicated region
        $region53: #{tpu_custom_call.1} parent=35 // pred_check
          %p1394 = pneg %p1393
        $region54: #{tpu_custom_call.1} parent=35 // pred_check_branch
          %1396 = sbr.rel (%p1394) target = $region56
        $region55: #{tpu_custom_call.1} parent=35 // pred_region
          %v1397 = vld [vmem:[#allocation2] sm:$0xff]
          %v1398 = vld [vmem:[#allocation2 + $0x8] sm:$0xff]
          %v1399 = vld [vmem:[#allocation2 + $0x10] sm:$0xff]
          %v1400 = vmul.f32 %v1397, 0.0625
          %v1401 = vmul.f32 %v1398, 0.0625
          %v1402 = vmul.f32 %v1399, 0.0625
          %v1403 = vld [vmem:[#allocation8] sm:$0xff]
          %v1404 = vld [vmem:[#allocation8 + $0x8] sm:$0xff]
          %v1405 = vld [vmem:[#allocation8 + $0x10] sm:$0xff]
          %v1406 = vld [vmem:[#allocation8 + $0x18] sm:$0xff]
          %v1407 = vld [vmem:[#allocation8 + $0x20] sm:$0xff]
          %v1408 = vld [vmem:[#allocation8 + $0x28] sm:$0xff]
          %v1409 = vld [vmem:[#allocation8 + $0x30] sm:$0xff]
          %v1410 = vld [vmem:[#allocation8 + $0x38] sm:$0xff]
          %v1411 = vld [vmem:[#allocation8 + $0x40] sm:$0xff]
          %v1412 = vld [vmem:[#allocation8 + $0x48] sm:$0xff]
          %v1413 = vld [vmem:[#allocation8 + $0x50] sm:$0xff]
          %v1414 = vld [vmem:[#allocation8 + $0x58] sm:$0xff]
          %v1415 = vld [vmem:[#allocation8 + $0x60] sm:$0xff]
          %v1416 = vld [vmem:[#allocation8 + $0x68] sm:$0xff]
          %v1417 = vld [vmem:[#allocation8 + $0x70] sm:$0xff]
          %v1418 = vld [vmem:[#allocation8 + $0x78] sm:$0xff]
          %v1419 = vld [vmem:[#allocation8 + $0x80] sm:$0xff]
          %v1420 = vld [vmem:[#allocation8 + $0x88] sm:$0xff]
          %v1421 = vld [vmem:[#allocation8 + $0x90] sm:$0xff]
          %v1422 = vld [vmem:[#allocation8 + $0x98] sm:$0xff]
          %v1423 = vld [vmem:[#allocation8 + $0xa0] sm:$0xff]
          %v1424 = vld [vmem:[#allocation8 + $0xa8] sm:$0xff]
          %v1425 = vld [vmem:[#allocation8 + $0xb0] sm:$0xff]
          %v1426 = vld [vmem:[#allocation8 + $0xb8] sm:$0xff]
          %v1427 = vld [vmem:[#allocation8 + $0xc0] sm:$0xff]
          %v1428 = vld [vmem:[#allocation8 + $0xc8] sm:$0xff]
          %v1429 = vld [vmem:[#allocation8 + $0xd0] sm:$0xff]
          %v1430 = vld [vmem:[#allocation8 + $0xd8] sm:$0xff]
          %v1431 = vld [vmem:[#allocation8 + $0xe0] sm:$0xff]
          %v1432 = vld [vmem:[#allocation8 + $0xe8] sm:$0xff]
          %v1433 = vld [vmem:[#allocation8 + $0xf0] sm:$0xff]
          %v1434 = vld [vmem:[#allocation8 + $0xf8] sm:$0xff]
          %v1435 = vld [vmem:[#allocation8 + $0x100] sm:$0xff]
          %v1436 = vld [vmem:[#allocation8 + $0x108] sm:$0xff]
          %v1437 = vld [vmem:[#allocation8 + $0x110] sm:$0xff]
          %v1438 = vld [vmem:[#allocation8 + $0x118] sm:$0xff]
          %v1439 = vld [vmem:[#allocation8 + $0x120] sm:$0xff]
          %v1440 = vld [vmem:[#allocation8 + $0x128] sm:$0xff]
          %v1441 = vld [vmem:[#allocation8 + $0x130] sm:$0xff]
          %v1442 = vld [vmem:[#allocation8 + $0x138] sm:$0xff]
          %v1443 = vld [vmem:[#allocation8 + $0x140] sm:$0xff]
          %v1444 = vld [vmem:[#allocation8 + $0x148] sm:$0xff]
          %v1445 = vld [vmem:[#allocation8 + $0x150] sm:$0xff]
          %v1446 = vld [vmem:[#allocation8 + $0x158] sm:$0xff]
          %v1447 = vld [vmem:[#allocation8 + $0x160] sm:$0xff]
          %v1448 = vld [vmem:[#allocation8 + $0x168] sm:$0xff]
          %v1449 = vld [vmem:[#allocation8 + $0x170] sm:$0xff]
          %v1450 = vld [vmem:[#allocation8 + $0x178] sm:$0xff]
          %v1451 = vld [vmem:[%s3] sm:$0x1]
          %v1453 = vlaneseq
          %v1454 = vshrl.u32 %v1453, 7
          %v1455 = vsub.s32 0, %v1454
          %v1456 = vrot.slane %v1451, %v1455
          %1458 = vmatprep.subr.mxu0 0.0
          %1459 = vmatpush1.msra.mxu0 %v1418
          %1460 = vmatprep.subr.mxu0 0.0
          %1461 = vmatpush1.msra.mxu0 %v1417
          %1462 = vmatprep.subr.mxu0 0.0
          %1463 = vmatpush1.msra.mxu0 %v1416
          %1464 = vmatprep.subr.mxu0 0.0
          %1465 = vmatpush1.msra.mxu0 %v1415
          %1466 = vmatprep.subr.mxu0 0.0
          %1467 = vmatpush1.msra.mxu0 %v1414
          %1468 = vmatprep.subr.mxu0 0.0
          %1469 = vmatpush1.msra.mxu0 %v1413
          %1470 = vmatprep.subr.mxu0 0.0
          %1471 = vmatpush1.msra.mxu0 %v1412
          %1472 = vmatprep.subr.mxu0 0.0
          %1473 = vmatpush1.msra.mxu0 %v1411
          %1474 = vmatprep.subr.mxu0 0.0
          %1475 = vmatpush1.msra.mxu0 %v1410
          %1476 = vmatprep.subr.mxu0 0.0
          %1477 = vmatpush1.msra.mxu0 %v1409
          %1478 = vmatprep.subr.mxu0 0.0
          %1479 = vmatpush1.msra.mxu0 %v1408
          %1480 = vmatprep.subr.mxu0 0.0
          %1481 = vmatpush1.msra.mxu0 %v1407
          %1482 = vmatprep.subr.mxu0 0.0
          %1483 = vmatpush1.msra.mxu0 %v1406
          %1484 = vmatprep.subr.mxu0 0.0
          %1485 = vmatpush1.msra.mxu0 %v1405
          %1486 = vmatprep.subr.mxu0 0.0
          %1487 = vmatpush1.msra.mxu0 %v1404
          %1488 = vmatprep.subr.mxu0 0.0
          %1489 = vmatpush1.msra.mxu0 %v1403
          %1490 = vmatprep.subr.mxu0 0.0
          %1491 = vmatpush2.msra.mxu0 %v1434
          %1492 = vmatprep.subr.mxu0 0.0
          %1493 = vmatpush2.msra.mxu0 %v1433
          %1494 = vmatprep.subr.mxu0 0.0
          %1495 = vmatpush2.msra.mxu0 %v1432
          %1496 = vmatprep.subr.mxu0 0.0
          %1497 = vmatpush2.msra.mxu0 %v1431
          %1498 = vmatprep.subr.mxu0 0.0
          %1499 = vmatpush2.msra.mxu0 %v1430
          %1500 = vmatprep.subr.mxu0 0.0
          %1501 = vmatpush2.msra.mxu0 %v1429
          %1502 = vmatprep.subr.mxu0 0.0
          %1503 = vmatpush2.msra.mxu0 %v1428
          %1504 = vmatprep.subr.mxu0 0.0
          %1505 = vmatpush2.msra.mxu0 %v1427
          %1506 = vmatprep.subr.mxu0 0.0
          %1507 = vmatpush2.msra.mxu0 %v1426
          %1508 = vmatprep.subr.mxu0 0.0
          %1509 = vmatpush2.msra.mxu0 %v1425
          %1510 = vmatprep.subr.mxu0 0.0
          %1511 = vmatpush2.msra.mxu0 %v1424
          %1512 = vmatprep.subr.mxu0 0.0
          %1513 = vmatpush2.msra.mxu0 %v1423
          %1514 = vmatprep.subr.mxu0 0.0
          %1515 = vmatpush2.msra.mxu0 %v1422
          %1516 = vmatprep.subr.mxu0 0.0
          %1517 = vmatpush2.msra.mxu0 %v1421
          %1518 = vmatprep.subr.mxu0 0.0
          %1519 = vmatpush2.msra.mxu0 %v1420
          %1520 = vmatprep.subr.mxu0 0.0
          %1521 = vmatpush2.msra.mxu0 %v1419
          %1522 = vmatprep.mubr.f32.mxu0 %v1401
          %1523 = vmatmul.mubr.f32.gmra.mxu0 %v1400
          %v1524 = vpop.f32.mrf.mxu0
          %v1525 = vadd.f32 %v1456, %v1524
          %v1526 = vpop.f32.mrf.mxu0
          %1527 = vdwg.mxu0
          %1528 = vmatprep.subr.mxu0 0.0
          %1529 = vmatpush1.msra.mxu0 %v1450
          %1530 = vmatprep.subr.mxu0 0.0
          %1531 = vmatpush1.msra.mxu0 %v1449
          %1532 = vmatprep.subr.mxu0 0.0
          %1533 = vmatpush1.msra.mxu0 %v1448
          %1534 = vmatprep.subr.mxu0 0.0
          %1535 = vmatpush1.msra.mxu0 %v1447
          %1536 = vmatprep.subr.mxu0 0.0
          %1537 = vmatpush1.msra.mxu0 %v1446
          %1538 = vmatprep.subr.mxu0 0.0
          %1539 = vmatpush1.msra.mxu0 %v1445
          %1540 = vmatprep.subr.mxu0 0.0
          %1541 = vmatpush1.msra.mxu0 %v1444
          %1542 = vmatprep.subr.mxu0 0.0
          %1543 = vmatpush1.msra.mxu0 %v1443
          %1544 = vmatprep.subr.mxu0 0.0
          %1545 = vmatpush1.msra.mxu0 %v1442
          %1546 = vmatprep.subr.mxu0 0.0
          %1547 = vmatpush1.msra.mxu0 %v1441
          %1548 = vmatprep.subr.mxu0 0.0
          %1549 = vmatpush1.msra.mxu0 %v1440
          %1550 = vmatprep.subr.mxu0 0.0
          %1551 = vmatpush1.msra.mxu0 %v1439
          %1552 = vmatprep.subr.mxu0 0.0
          %1553 = vmatpush1.msra.mxu0 %v1438
          %1554 = vmatprep.subr.mxu0 0.0
          %1555 = vmatpush1.msra.mxu0 %v1437
          %1556 = vmatprep.subr.mxu0 0.0
          %1557 = vmatpush1.msra.mxu0 %v1436
          %1558 = vmatprep.subr.mxu0 0.0
          %1559 = vmatpush1.msra.mxu0 %v1435
          %1560 = vmatprep.subr.mxu0 0.0
          %1561 = vmatpush2.msra.mxu0 0.0
          %1562 = vmatprep.subr.mxu0 0.0
          %1563 = vmatpush2.msra.mxu0 0.0
          %1564 = vmatprep.subr.mxu0 0.0
          %1565 = vmatpush2.msra.mxu0 0.0
          %1566 = vmatprep.subr.mxu0 0.0
          %1567 = vmatpush2.msra.mxu0 0.0
          %1568 = vmatprep.subr.mxu0 0.0
          %1569 = vmatpush2.msra.mxu0 0.0
          %1570 = vmatprep.subr.mxu0 0.0
          %1571 = vmatpush2.msra.mxu0 0.0
          %1572 = vmatprep.subr.mxu0 0.0
          %1573 = vmatpush2.msra.mxu0 0.0
          %1574 = vmatprep.subr.mxu0 0.0
          %1575 = vmatpush2.msra.mxu0 0.0
          %1576 = vmatprep.subr.mxu0 0.0
          %1577 = vmatpush2.msra.mxu0 0.0
          %1578 = vmatprep.subr.mxu0 0.0
          %1579 = vmatpush2.msra.mxu0 0.0
          %1580 = vmatprep.subr.mxu0 0.0
          %1581 = vmatpush2.msra.mxu0 0.0
          %1582 = vmatprep.subr.mxu0 0.0
          %1583 = vmatpush2.msra.mxu0 0.0
          %1584 = vmatprep.subr.mxu0 0.0
          %1585 = vmatpush2.msra.mxu0 0.0
          %1586 = vmatprep.subr.mxu0 0.0
          %1587 = vmatpush2.msra.mxu0 0.0
          %1588 = vmatprep.subr.mxu0 0.0
          %1589 = vmatpush2.msra.mxu0 0.0
          %1590 = vmatprep.subr.mxu0 0.0
          %1591 = vmatpush2.msra.mxu0 0.0
          %1592 = vmatprep.mubr.f32.mxu0 0.0
          %1593 = vmatmul.mubr.f32.gmra.mxu0 %v1402
          %v1594 = vpop.f32.mrf.mxu0
          %v1595 = vadd.f32 %v1525, %v1594
          %v1596 = vpop.f32.mrf.mxu0
          %1597 = vdwg.mxu0
          %1598 = vst [vmem:[#allocation9] sm:$0xff] %v1595
        $region56: #{tpu_custom_call.1} parent=35 // pred_fallthru
          _
        // Predicated region
        $region57: #{tpu_custom_call.1} parent=35 // pred_check
          %p1599 = pneg %p144
        $region58: #{tpu_custom_call.1} parent=35 // pred_check_branch
          %1601 = sbr.rel (%p1599) target = $region60
        $region59: #{tpu_custom_call.1} parent=35 // pred_region
          %s1603 = ssub.s32 128, 128
          %1604 = vsyncadd [#allocation5], %s1603
          %s1605 = smul.addr %s24, 128
          %s1606 = scalar_lea.hbm %s4, %s1605
          %s1608 = sshll.u32 [#allocation9], 4
          %s1609 = int_to_ptr.vmem [resolvable:$true] %s1608
          %1611 = dma.vmem_to_hbm [thread:$0]  %s1609, 128, %s1606, [#allocation5]
        $region60: #{tpu_custom_call.1} parent=35 // pred_fallthru
          _
        // Predicated region
        $region61: #{tpu_custom_call.1} parent=35 // pred_check
          %p1612 = pneg %p144
        $region62: #{tpu_custom_call.1} parent=35 // pred_check_branch
          %1614 = sbr.rel (%p1612) target = $region64
        $region63: #{tpu_custom_call.1} parent=35 // pred_region
          %1615 = dma.done [#allocation5], 128
        $region64: #{tpu_custom_call.1} parent=35 // pred_fallthru
          _
      $region36: #{tpu_custom_call.1} parent=5 // pred_fallthru
        _
      %p1616 = scmp.le.s32.totalorder 2, %s15
      // Predicated region
      $region65: #{tpu_custom_call.1} parent=5 // pred_check
        %p1617 = pneg %p1616
      $region66: #{tpu_custom_call.1} parent=5 // pred_check_branch
        %1619 = sbr.rel (%p1617) target = $region68
      $region67: #{tpu_custom_call.1} parent=5 // pred_region
        %s1620 = ssub.s32 %s15, 2
      $region68: #{tpu_custom_call.1} parent=5 // pred_fallthru
        _
    $region6: #{tpu_custom_call.1} parent=1 // loop_footer
      %s19 = sadd.s32 1, %s15
    $region7: #{tpu_custom_call.1} parent=1 // loop_footer_branch
      %14 = sbr.rel target = $region3
    $region8: #{tpu_custom_call.1} parent=1 // loop_exit
      _
    %1621 = vsyncpa [#allocation4], 1
    %s1622 = scalar_lea.sflag [#allocation4], 1
    %1623 = vsyncpa %s1622, 1
    %1624 = vsyncpa [#allocation7], 1
    %s1625 = scalar_lea.sflag [#allocation7], 1
    %1626 = vsyncpa %s1625, 1
    %1627 = vsyncpa [#allocation5], 1
    %s1628 = scalar_lea.sflag [#allocation5], 1
    %1629 = vsyncpa %s1628, 1

</llo_original>
